<compile_context>
chip_gen: v5e
topology: v5e:2x2
jax: 0.10.0
libtpu: 0.0.40
codegen_flags: <defaults>
</compile_context>

<pallas_src>
import jax
import jax.numpy as jnp
from jax.experimental import pallas as pl
from jax.experimental.pallas import tpu as pltpu

INPUT_DIM = 64
HIDDEN_DIM = 10
SEQ_LEN = 8          # the "b" in the module's docstring
GATE_LANES = 128     # each gate padded to one full 128-lane block
NUM_GATES = 4
WHH_K = 16           # padded contraction (sublane) dim of W_hh (bf16 min tile)

# Kernel lane-block order is (i, f, o, g) so the sigmoid gates are contiguous;
# GATE_SRC[k] = PyTorch gate row-block feeding kernel lane block k
# (PyTorch row order is i, f, g, o).
GATE_SRC = (0, 1, 3, 2)


def lstm_kernel(x_ref, wih_ref, whh_hbm_ref, b_ref, out_ref, hn_ref, cn_ref,
                xw_ref, whh_ref, dma_sem):
    """LSTM recurrence; everything except W_hh (HBM, manually DMA'd) in VMEM.

    x_ref       : (S, D)          f32  input sequence
    wih_ref     : (D, 4*128)      f32  lane-aligned transposed W_ih (zero pad)
    whh_hbm_ref : (16, 4*128)     bf16 lane-aligned transposed W_hh, in HBM
    b_ref       : (1, 4*128)      f32  combined bias (b_ih + b_hh)
    out_ref     : (S, 128)        f32  per-step hidden states (lanes 0..H-1)
    hn_ref      : (1, 128)        f32  final hidden state
    cn_ref      : (1, 128)        f32  final cell state
    xw_ref      : (S, 4*128) VMEM f32  scratch: hoisted input projection
    whh_ref     : (16, 4*128) VMEM bf16 scratch: W_hh landing buffer
    dma_sem     : DMA semaphore for the W_hh copy
    """
    S = x_ref.shape[0]
    GL = GATE_LANES

    # Kick off the W_hh HBM->VMEM copy; it is not needed until after the
    # hoisted input projection, so it rides for free under the MXU matmul.
    whh_cp = pltpu.make_async_copy(whh_hbm_ref, whh_ref, dma_sem)
    whh_cp.start()

    # Hoisted input projection + bias: ONE MXU matmul, off the serial chain.
    xw_ref[...] = (
        jnp.dot(x_ref[...], wih_ref[...], preferred_element_type=jnp.float32)
        + b_ref[...]
    )

    whh_cp.wait()

    h = jnp.zeros((1, GL), dtype=jnp.float32)
    c = jnp.zeros((1, GL), dtype=jnp.float32)

    # Sequence length is small & static -> unroll (the recurrence is inherently
    # sequential; no useful grid parallelism over time).
    for t in range(S):
        # Per-step critical chain: (1,16)bf16 x (16,512)bf16 MXU matmul
        # (single pass), one vreg add, 3+1 activations, pure-VPU cell update.
        h_lhs = h[:, :WHH_K].astype(jnp.bfloat16)          # (1, 16)
        gates = xw_ref[pl.ds(t, 1), :] + jnp.dot(
            h_lhs, whh_ref[...], preferred_element_type=jnp.float32)  # (1,512)

        # Gate blocks are (i, f, o, g): one contiguous sigmoid + one tanh.
        sig = jax.nn.sigmoid(gates[:, :3 * GL])
        i_g = sig[:, 0 * GL:1 * GL]
        f_g = sig[:, 1 * GL:2 * GL]
        o_g = sig[:, 2 * GL:3 * GL]
        g_g = jnp.tanh(gates[:, 3 * GL:4 * GL])

        # Padded lanes stay exactly 0: g_pad = tanh(0) = 0, so
        # c_pad = 0.5*0 + 0.5*0 = 0 and h_pad = 0.5*tanh(0) = 0.
        c = f_g * c + i_g * g_g
        h = o_g * jnp.tanh(c)

        # Direct lane-dense per-step row store (vst slot slack).
        out_ref[pl.ds(t, 1), :] = h

    hn_ref[...] = h
    cn_ref[...] = c


def prepare_lstm_params(w_ih, w_hh, b_ih, b_hh):
    """One-time prep: transpose, fold biases, lane-align + reorder gates.

    w_ih : (4H, D), w_hh : (4H, H), b_ih / b_hh : (4H,)   (PyTorch layout)
    Returns (wih_t f32, whh_t bf16 with 16-row contraction dim, bias f32).
    """
    H4, D = w_ih.shape
    H = H4 // NUM_GATES
    GL = GATE_LANES

    w_ih = jnp.asarray(w_ih, jnp.float32)
    w_hh = jnp.asarray(w_hh, jnp.float32)
    bsum = jnp.asarray(b_ih, jnp.float32) + jnp.asarray(b_hh, jnp.float32)

    wih_t = jnp.zeros((D, NUM_GATES * GL), jnp.float32)
    whh_t = jnp.zeros((WHH_K, NUM_GATES * GL), jnp.float32)
    b = jnp.zeros((1, NUM_GATES * GL), jnp.float32)
    for k, g in enumerate(GATE_SRC):          # kernel block k <- torch gate g
        lo = k * GL
        rows = slice(g * H, (g + 1) * H)
        wih_t = wih_t.at[:, lo:lo + H].set(w_ih[rows, :].T)
        whh_t = whh_t.at[:H, lo:lo + H].set(w_hh[rows, :].T)
        b = b.at[:, lo:lo + H].set(bsum[rows])
    return wih_t, whh_t.astype(jnp.bfloat16), b


@jax.jit
def _lstm_forward(x, wih_t, whh_t, b):
    S, _ = x.shape
    H = HIDDEN_DIM
    GL = GATE_LANES

    vmem = pl.BlockSpec(memory_space=pltpu.MemorySpace.VMEM)
    out_p, hn_p, cn_p = pl.pallas_call(
        lstm_kernel,
        out_shape=(
            jax.ShapeDtypeStruct((S, GL), jnp.float32),
            jax.ShapeDtypeStruct((1, GL), jnp.float32),
            jax.ShapeDtypeStruct((1, GL), jnp.float32),
        ),
        in_specs=[
            vmem,                                   # x
            vmem,                                   # W_ih (f32, needed first)
            pl.BlockSpec(memory_space=pl.ANY),      # W_hh stays in HBM
            vmem,                                   # bias
        ],
        out_specs=(vmem, vmem, vmem),
        scratch_shapes=[
            pltpu.VMEM((S, NUM_GATES * GL), jnp.float32),       # xw scratch
            pltpu.VMEM((WHH_K, NUM_GATES * GL), jnp.bfloat16),  # W_hh landing
            pltpu.SemaphoreType.DMA(()),
        ],
    )(jnp.asarray(x, jnp.float32), wih_t, whh_t, b)

    # Slice back to the live H lanes (stores inside the kernel are lane-dense).
    return out_p[:, :H], (hn_p[:, :H], cn_p[:, :H])


def lstm_cell_module(x, params):
    """Mirrors LSTMCellModule.forward: returns (output, (h_n, c_n))."""
    wih_t, whh_t, b = params
    return _lstm_forward(x, wih_t, whh_t, b)


def _reference_lstm(x, w_ih, w_hh, b_ih, b_hh):
    """Pure-JAX f32 reference (mirrors PyTorch nn.LSTM, unbatched)."""
    S, _ = x.shape
    H = w_hh.shape[1]
    h = jnp.zeros((H,), jnp.float32)
    c = jnp.zeros((H,), jnp.float32)
    outs = []
    for t in range(S):
        gates = x[t] @ w_ih.T + b_ih + h @ w_hh.T + b_hh
        i = jax.nn.sigmoid(gates[0:H])
        f = jax.nn.sigmoid(gates[H:2 * H])
        g = jnp.tanh(gates[2 * H:3 * H])
        o = jax.nn.sigmoid(gates[3 * H:4 * H])
        c = f * c + i * g
        h = o * jnp.tanh(c)
        outs.append(h)
    return jnp.stack(outs, 0), h[None, :], c[None, :]


if __name__ == "__main__":
    key = jax.random.PRNGKey(0)
    k_x, k_wih, k_whh, k_bih, k_bhh = jax.random.split(key, 5)

    # Deterministic init (PyTorch LSTM default: U(-k, k), k = 1/sqrt(H)).
    kinit = 1.0 / (HIDDEN_DIM ** 0.5)
    w_ih = jax.random.uniform(k_wih, (4 * HIDDEN_DIM, INPUT_DIM),
                              jnp.float32, -kinit, kinit)
    w_hh = jax.random.uniform(k_whh, (4 * HIDDEN_DIM, HIDDEN_DIM),
                              jnp.float32, -kinit, kinit)
    b_ih = jax.random.uniform(k_bih, (4 * HIDDEN_DIM,), jnp.float32,
                              -kinit, kinit)
    b_hh = jax.random.uniform(k_bhh, (4 * HIDDEN_DIM,), jnp.float32,
                              -kinit, kinit)

    # x: (seq=8, input_dim=64), i.e. the module docstring's (b, 64).
    x = jax.random.normal(k_x, (SEQ_LEN, INPUT_DIM), jnp.float32)

    # One-time param prep (transpose / pad / bias fold / bf16 W_hh).
    params = prepare_lstm_params(w_ih, w_hh, b_ih, b_hh)

    h_t, (h_n, c_n) = lstm_cell_module(x, params)
    jax.block_until_ready((h_t, h_n, c_n))

    # Correctness check vs. the f32 reference.  Tolerance is relaxed to 2e-2
    # because the recurrent matmul uses bf16 W_hh / h (measured error ~1e-3).
    ref_out, ref_hn, ref_cn = _reference_lstm(x, w_ih, w_hh, b_ih, b_hh)
    assert jnp.allclose(h_t, ref_out, rtol=2e-2, atol=2e-2)
    assert jnp.allclose(h_n, ref_hn, rtol=2e-2, atol=2e-2)
    assert jnp.allclose(c_n, ref_cn, rtol=2e-2, atol=2e-2)

    print("KERNEL_OK")
</pallas_src>

<mosaic_0001>
module attributes {stable_mosaic.version = 11 : i64} {
  func.func @lstm_kernel(%arg0: memref<8x64xf32, #tpu.memory_space<vmem>>, %arg1: memref<64x512xf32, #tpu.memory_space<vmem>>, %arg2: memref<16x512xbf16, #tpu.memory_space<any>>, %arg3: memref<1x512xf32, #tpu.memory_space<vmem>>, %arg4: memref<8x128xf32, #tpu.memory_space<vmem>>, %arg5: memref<1x128xf32, #tpu.memory_space<vmem>>, %arg6: memref<1x128xf32, #tpu.memory_space<vmem>>, %arg7: memref<8x512xf32, #tpu.memory_space<vmem>>, %arg8: memref<16x512xbf16, #tpu.memory_space<vmem>>, %arg9: memref<!tpu.dma_semaphore, #tpu.memory_space<semaphore_mem>>) attributes {dimension_semantics = [], scalar_prefetch = 0 : i64, scratch_operands = 3 : i64, tpu.core_type = #tpu.core_type<tc>} {
    tpu.enqueue_dma source(%arg2 : memref<16x512xbf16, #tpu.memory_space<any>>) target(%arg8 : memref<16x512xbf16, #tpu.memory_space<vmem>>) target_semaphore(%arg9 : memref<!tpu.dma_semaphore, #tpu.memory_space<semaphore_mem>>)
    %c0 = arith.constant 0 : index
    %c0_0 = arith.constant 0 : index
    %0 = vector.load %arg0[%c0, %c0_0] : memref<8x64xf32, #tpu.memory_space<vmem>>, vector<8x64xf32>
    %c0_1 = arith.constant 0 : index
    %c0_2 = arith.constant 0 : index
    %1 = vector.load %arg1[%c0_1, %c0_2] : memref<64x512xf32, #tpu.memory_space<vmem>>, vector<64x512xf32>
    %cst = arith.constant dense<0.000000e+00> : vector<8x512xf32>
    %2 = tpu.matmul %0, %1, %cst {dimension_numbers = #tpu.dot_dimension_numbers<[1], [0], [0], [1], [0, 0, 1, 1], [], []>} : vector<8x64xf32>, vector<64x512xf32>, vector<8x512xf32> -> vector<8x512xf32>
    %c0_3 = arith.constant 0 : index
    %c0_4 = arith.constant 0 : index
    %3 = vector.load %arg3[%c0_3, %c0_4] : memref<1x512xf32, #tpu.memory_space<vmem>>, vector<1x512xf32>
    %4 = vector.broadcast %3 : vector<1x512xf32> to vector<8x512xf32>
    %5 = arith.addf %2, %4 : vector<8x512xf32>
    %c0_5 = arith.constant 0 : index
    %c0_6 = arith.constant 0 : index
    %6 = vector.load %arg7[%c0_5, %c0_6] : memref<8x512xf32, #tpu.memory_space<vmem>>, vector<8x512xf32>
    tpu.vector_store %arg7[%c0_5, %c0_6], %5 {strides = array<i32>} : memref<8x512xf32, #tpu.memory_space<vmem>>, vector<8x512xf32>,
    tpu.wait_dma2 semaphore(%arg9 : memref<!tpu.dma_semaphore, #tpu.memory_space<semaphore_mem>>) src(%arg2 : memref<16x512xbf16, #tpu.memory_space<any>>) dst(%arg8 : memref<16x512xbf16, #tpu.memory_space<vmem>>)
    %cst_7 = arith.constant 0.000000e+00 : f32
    %7 = vector.broadcast %cst_7 : f32 to vector<1x128xf32>
    %cst_8 = arith.constant 0.000000e+00 : f32
    %8 = vector.broadcast %cst_8 : f32 to vector<1x128xf32>
    %9 = vector.extract_strided_slice %7 {offsets = [0, 0], sizes = [1, 16], strides = [1, 1]} : vector<1x128xf32> to vector<1x16xf32>
    %10 = arith.truncf %9 : vector<1x16xf32> to vector<1x16xbf16>
    %c0_9 = arith.constant 0 : index
    %c0_10 = arith.constant 0 : index
    %11 = vector.load %arg7[%c0_9, %c0_10] : memref<8x512xf32, #tpu.memory_space<vmem>>, vector<1x512xf32>
    %c0_11 = arith.constant 0 : index
    %c0_12 = arith.constant 0 : index
    %12 = vector.load %arg8[%c0_11, %c0_12] : memref<16x512xbf16, #tpu.memory_space<vmem>>, vector<16x512xbf16>
    %cst_13 = arith.constant dense<0.000000e+00> : vector<1x512xf32>
    %13 = tpu.matmul %10, %12, %cst_13 {dimension_numbers = #tpu.dot_dimension_numbers<[1], [0], [0], [1], [0, 0, 1, 1], [], []>} : vector<1x16xbf16>, vector<16x512xbf16>, vector<1x512xf32> -> vector<1x512xf32>
    %14 = arith.addf %11, %13 : vector<1x512xf32>
    %15 = vector.extract_strided_slice %14 {offsets = [0, 0], sizes = [1, 384], strides = [1, 1]} : vector<1x512xf32> to vector<1x384xf32>
    %16 = arith.negf %15 : vector<1x384xf32>
    %17 = math.exp %16 : vector<1x384xf32>
    %cst_14 = arith.constant 1.000000e+00 : f32
    %18 = vector.broadcast %cst_14 : f32 to vector<1x384xf32>
    %19 = arith.addf %18, %17 : vector<1x384xf32>
    %20 = arith.divf %18, %19 : vector<1x384xf32>
    %21 = vector.extract_strided_slice %20 {offsets = [0, 0], sizes = [1, 128], strides = [1, 1]} : vector<1x384xf32> to vector<1x128xf32>
    %22 = vector.extract_strided_slice %20 {offsets = [0, 128], sizes = [1, 128], strides = [1, 1]} : vector<1x384xf32> to vector<1x128xf32>
    %23 = vector.extract_strided_slice %20 {offsets = [0, 256], sizes = [1, 128], strides = [1, 1]} : vector<1x384xf32> to vector<1x128xf32>
    %24 = vector.extract_strided_slice %14 {offsets = [0, 384], sizes = [1, 128], strides = [1, 1]} : vector<1x512xf32> to vector<1x128xf32>
    %25 = math.tanh %24 : vector<1x128xf32>
    %26 = arith.mulf %22, %8 : vector<1x128xf32>
    %27 = arith.mulf %21, %25 : vector<1x128xf32>
    %28 = arith.addf %26, %27 : vector<1x128xf32>
    %29 = math.tanh %28 : vector<1x128xf32>
    %30 = arith.mulf %23, %29 : vector<1x128xf32>
    %c0_15 = arith.constant 0 : index
    %c0_16 = arith.constant 0 : index
    %31 = vector.load %arg4[%c0_15, %c0_16] : memref<8x128xf32, #tpu.memory_space<vmem>>, vector<1x128xf32>
    tpu.vector_store %arg4[%c0_15, %c0_16], %30 {strides = array<i32>} : memref<8x128xf32, #tpu.memory_space<vmem>>, vector<1x128xf32>,
    %32 = vector.extract_strided_slice %30 {offsets = [0, 0], sizes = [1, 16], strides = [1, 1]} : vector<1x128xf32> to vector<1x16xf32>
    %33 = arith.truncf %32 : vector<1x16xf32> to vector<1x16xbf16>
    %c1 = arith.constant 1 : index
    %c0_17 = arith.constant 0 : index
    %34 = vector.load %arg7[%c1, %c0_17] : memref<8x512xf32, #tpu.memory_space<vmem>>, vector<1x512xf32>
    %c0_18 = arith.constant 0 : index
    %c0_19 = arith.constant 0 : index
    %35 = vector.load %arg8[%c0_18, %c0_19] : memref<16x512xbf16, #tpu.memory_space<vmem>>, vector<16x512xbf16>
    %cst_20 = arith.constant dense<0.000000e+00> : vector<1x512xf32>
    %36 = tpu.matmul %33, %35, %cst_20 {dimension_numbers = #tpu.dot_dimension_numbers<[1], [0], [0], [1], [0, 0, 1, 1], [], []>} : vector<1x16xbf16>, vector<16x512xbf16>, vector<1x512xf32> -> vector<1x512xf32>
    %37 = arith.addf %34, %36 : vector<1x512xf32>
    %38 = vector.extract_strided_slice %37 {offsets = [0, 0], sizes = [1, 384], strides = [1, 1]} : vector<1x512xf32> to vector<1x384xf32>
    %39 = arith.negf %38 : vector<1x384xf32>
    %40 = math.exp %39 : vector<1x384xf32>
    %cst_21 = arith.constant 1.000000e+00 : f32
    %41 = vector.broadcast %cst_21 : f32 to vector<1x384xf32>
    %42 = arith.addf %41, %40 : vector<1x384xf32>
    %43 = arith.divf %41, %42 : vector<1x384xf32>
    %44 = vector.extract_strided_slice %43 {offsets = [0, 0], sizes = [1, 128], strides = [1, 1]} : vector<1x384xf32> to vector<1x128xf32>
    %45 = vector.extract_strided_slice %43 {offsets = [0, 128], sizes = [1, 128], strides = [1, 1]} : vector<1x384xf32> to vector<1x128xf32>
    %46 = vector.extract_strided_slice %43 {offsets = [0, 256], sizes = [1, 128], strides = [1, 1]} : vector<1x384xf32> to vector<1x128xf32>
    %47 = vector.extract_strided_slice %37 {offsets = [0, 384], sizes = [1, 128], strides = [1, 1]} : vector<1x512xf32> to vector<1x128xf32>
    %48 = math.tanh %47 : vector<1x128xf32>
    %49 = arith.mulf %45, %28 : vector<1x128xf32>
    %50 = arith.mulf %44, %48 : vector<1x128xf32>
    %51 = arith.addf %49, %50 : vector<1x128xf32>
    %52 = math.tanh %51 : vector<1x128xf32>
    %53 = arith.mulf %46, %52 : vector<1x128xf32>
    %c1_22 = arith.constant 1 : index
    %c0_23 = arith.constant 0 : index
    %54 = vector.load %arg4[%c1_22, %c0_23] : memref<8x128xf32, #tpu.memory_space<vmem>>, vector<1x128xf32>
    tpu.vector_store %arg4[%c1_22, %c0_23], %53 {strides = array<i32>} : memref<8x128xf32, #tpu.memory_space<vmem>>, vector<1x128xf32>,
    %55 = vector.extract_strided_slice %53 {offsets = [0, 0], sizes = [1, 16], strides = [1, 1]} : vector<1x128xf32> to vector<1x16xf32>
    %56 = arith.truncf %55 : vector<1x16xf32> to vector<1x16xbf16>
    %c2 = arith.constant 2 : index
    %c0_24 = arith.constant 0 : index
    %57 = vector.load %arg7[%c2, %c0_24] : memref<8x512xf32, #tpu.memory_space<vmem>>, vector<1x512xf32>
    %c0_25 = arith.constant 0 : index
    %c0_26 = arith.constant 0 : index
    %58 = vector.load %arg8[%c0_25, %c0_26] : memref<16x512xbf16, #tpu.memory_space<vmem>>, vector<16x512xbf16>
    %cst_27 = arith.constant dense<0.000000e+00> : vector<1x512xf32>
    %59 = tpu.matmul %56, %58, %cst_27 {dimension_numbers = #tpu.dot_dimension_numbers<[1], [0], [0], [1], [0, 0, 1, 1], [], []>} : vector<1x16xbf16>, vector<16x512xbf16>, vector<1x512xf32> -> vector<1x512xf32>
    %60 = arith.addf %57, %59 : vector<1x512xf32>
    %61 = vector.extract_strided_slice %60 {offsets = [0, 0], sizes = [1, 384], strides = [1, 1]} : vector<1x512xf32> to vector<1x384xf32>
    %62 = arith.negf %61 : vector<1x384xf32>
    %63 = math.exp %62 : vector<1x384xf32>
    %cst_28 = arith.constant 1.000000e+00 : f32
    %64 = vector.broadcast %cst_28 : f32 to vector<1x384xf32>
    %65 = arith.addf %64, %63 : vector<1x384xf32>
    %66 = arith.divf %64, %65 : vector<1x384xf32>
    %67 = vector.extract_strided_slice %66 {offsets = [0, 0], sizes = [1, 128], strides = [1, 1]} : vector<1x384xf32> to vector<1x128xf32>
    %68 = vector.extract_strided_slice %66 {offsets = [0, 128], sizes = [1, 128], strides = [1, 1]} : vector<1x384xf32> to vector<1x128xf32>
    %69 = vector.extract_strided_slice %66 {offsets = [0, 256], sizes = [1, 128], strides = [1, 1]} : vector<1x384xf32> to vector<1x128xf32>
    %70 = vector.extract_strided_slice %60 {offsets = [0, 384], sizes = [1, 128], strides = [1, 1]} : vector<1x512xf32> to vector<1x128xf32>
    %71 = math.tanh %70 : vector<1x128xf32>
    %72 = arith.mulf %68, %51 : vector<1x128xf32>
    %73 = arith.mulf %67, %71 : vector<1x128xf32>
    %74 = arith.addf %72, %73 : vector<1x128xf32>
    %75 = math.tanh %74 : vector<1x128xf32>
    %76 = arith.mulf %69, %75 : vector<1x128xf32>
    %c2_29 = arith.constant 2 : index
    %c0_30 = arith.constant 0 : index
    %77 = vector.load %arg4[%c2_29, %c0_30] : memref<8x128xf32, #tpu.memory_space<vmem>>, vector<1x128xf32>
    tpu.vector_store %arg4[%c2_29, %c0_30], %76 {strides = array<i32>} : memref<8x128xf32, #tpu.memory_space<vmem>>, vector<1x128xf32>,
    %78 = vector.extract_strided_slice %76 {offsets = [0, 0], sizes = [1, 16], strides = [1, 1]} : vector<1x128xf32> to vector<1x16xf32>
    %79 = arith.truncf %78 : vector<1x16xf32> to vector<1x16xbf16>
    %c3 = arith.constant 3 : index
    %c0_31 = arith.constant 0 : index
    %80 = vector.load %arg7[%c3, %c0_31] : memref<8x512xf32, #tpu.memory_space<vmem>>, vector<1x512xf32>
    %c0_32 = arith.constant 0 : index
    %c0_33 = arith.constant 0 : index
    %81 = vector.load %arg8[%c0_32, %c0_33] : memref<16x512xbf16, #tpu.memory_space<vmem>>, vector<16x512xbf16>
    %cst_34 = arith.constant dense<0.000000e+00> : vector<1x512xf32>
    %82 = tpu.matmul %79, %81, %cst_34 {dimension_numbers = #tpu.dot_dimension_numbers<[1], [0], [0], [1], [0, 0, 1, 1], [], []>} : vector<1x16xbf16>, vector<16x512xbf16>, vector<1x512xf32> -> vector<1x512xf32>
    %83 = arith.addf %80, %82 : vector<1x512xf32>
    %84 = vector.extract_strided_slice %83 {offsets = [0, 0], sizes = [1, 384], strides = [1, 1]} : vector<1x512xf32> to vector<1x384xf32>
    %85 = arith.negf %84 : vector<1x384xf32>
    %86 = math.exp %85 : vector<1x384xf32>
    %cst_35 = arith.constant 1.000000e+00 : f32
    %87 = vector.broadcast %cst_35 : f32 to vector<1x384xf32>
    %88 = arith.addf %87, %86 : vector<1x384xf32>
    %89 = arith.divf %87, %88 : vector<1x384xf32>
    %90 = vector.extract_strided_slice %89 {offsets = [0, 0], sizes = [1, 128], strides = [1, 1]} : vector<1x384xf32> to vector<1x128xf32>
    %91 = vector.extract_strided_slice %89 {offsets = [0, 128], sizes = [1, 128], strides = [1, 1]} : vector<1x384xf32> to vector<1x128xf32>
    %92 = vector.extract_strided_slice %89 {offsets = [0, 256], sizes = [1, 128], strides = [1, 1]} : vector<1x384xf32> to vector<1x128xf32>
    %93 = vector.extract_strided_slice %83 {offsets = [0, 384], sizes = [1, 128], strides = [1, 1]} : vector<1x512xf32> to vector<1x128xf32>
    %94 = math.tanh %93 : vector<1x128xf32>
    %95 = arith.mulf %91, %74 : vector<1x128xf32>
    %96 = arith.mulf %90, %94 : vector<1x128xf32>
    %97 = arith.addf %95, %96 : vector<1x128xf32>
    %98 = math.tanh %97 : vector<1x128xf32>
    %99 = arith.mulf %92, %98 : vector<1x128xf32>
    %c3_36 = arith.constant 3 : index
    %c0_37 = arith.constant 0 : index
    %100 = vector.load %arg4[%c3_36, %c0_37] : memref<8x128xf32, #tpu.memory_space<vmem>>, vector<1x128xf32>
    tpu.vector_store %arg4[%c3_36, %c0_37], %99 {strides = array<i32>} : memref<8x128xf32, #tpu.memory_space<vmem>>, vector<1x128xf32>,
    %101 = vector.extract_strided_slice %99 {offsets = [0, 0], sizes = [1, 16], strides = [1, 1]} : vector<1x128xf32> to vector<1x16xf32>
    %102 = arith.truncf %101 : vector<1x16xf32> to vector<1x16xbf16>
    %c4 = arith.constant 4 : index
    %c0_38 = arith.constant 0 : index
    %103 = vector.load %arg7[%c4, %c0_38] : memref<8x512xf32, #tpu.memory_space<vmem>>, vector<1x512xf32>
    %c0_39 = arith.constant 0 : index
    %c0_40 = arith.constant 0 : index
    %104 = vector.load %arg8[%c0_39, %c0_40] : memref<16x512xbf16, #tpu.memory_space<vmem>>, vector<16x512xbf16>
    %cst_41 = arith.constant dense<0.000000e+00> : vector<1x512xf32>
    %105 = tpu.matmul %102, %104, %cst_41 {dimension_numbers = #tpu.dot_dimension_numbers<[1], [0], [0], [1], [0, 0, 1, 1], [], []>} : vector<1x16xbf16>, vector<16x512xbf16>, vector<1x512xf32> -> vector<1x512xf32>
    %106 = arith.addf %103, %105 : vector<1x512xf32>
    %107 = vector.extract_strided_slice %106 {offsets = [0, 0], sizes = [1, 384], strides = [1, 1]} : vector<1x512xf32> to vector<1x384xf32>
    %108 = arith.negf %107 : vector<1x384xf32>
    %109 = math.exp %108 : vector<1x384xf32>
    %cst_42 = arith.constant 1.000000e+00 : f32
    %110 = vector.broadcast %cst_42 : f32 to vector<1x384xf32>
    %111 = arith.addf %110, %109 : vector<1x384xf32>
    %112 = arith.divf %110, %111 : vector<1x384xf32>
    %113 = vector.extract_strided_slice %112 {offsets = [0, 0], sizes = [1, 128], strides = [1, 1]} : vector<1x384xf32> to vector<1x128xf32>
    %114 = vector.extract_strided_slice %112 {offsets = [0, 128], sizes = [1, 128], strides = [1, 1]} : vector<1x384xf32> to vector<1x128xf32>
    %115 = vector.extract_strided_slice %112 {offsets = [0, 256], sizes = [1, 128], strides = [1, 1]} : vector<1x384xf32> to vector<1x128xf32>
    %116 = vector.extract_strided_slice %106 {offsets = [0, 384], sizes = [1, 128], strides = [1, 1]} : vector<1x512xf32> to vector<1x128xf32>
    %117 = math.tanh %116 : vector<1x128xf32>
    %118 = arith.mulf %114, %97 : vector<1x128xf32>
    %119 = arith.mulf %113, %117 : vector<1x128xf32>
    %120 = arith.addf %118, %119 : vector<1x128xf32>
    %121 = math.tanh %120 : vector<1x128xf32>
    %122 = arith.mulf %115, %121 : vector<1x128xf32>
    %c4_43 = arith.constant 4 : index
    %c0_44 = arith.constant 0 : index
    %123 = vector.load %arg4[%c4_43, %c0_44] : memref<8x128xf32, #tpu.memory_space<vmem>>, vector<1x128xf32>
    tpu.vector_store %arg4[%c4_43, %c0_44], %122 {strides = array<i32>} : memref<8x128xf32, #tpu.memory_space<vmem>>, vector<1x128xf32>,
    %124 = vector.extract_strided_slice %122 {offsets = [0, 0], sizes = [1, 16], strides = [1, 1]} : vector<1x128xf32> to vector<1x16xf32>
    %125 = arith.truncf %124 : vector<1x16xf32> to vector<1x16xbf16>
    %c5 = arith.constant 5 : index
    %c0_45 = arith.constant 0 : index
    %126 = vector.load %arg7[%c5, %c0_45] : memref<8x512xf32, #tpu.memory_space<vmem>>, vector<1x512xf32>
    %c0_46 = arith.constant 0 : index
    %c0_47 = arith.constant 0 : index
    %127 = vector.load %arg8[%c0_46, %c0_47] : memref<16x512xbf16, #tpu.memory_space<vmem>>, vector<16x512xbf16>
    %cst_48 = arith.constant dense<0.000000e+00> : vector<1x512xf32>
    %128 = tpu.matmul %125, %127, %cst_48 {dimension_numbers = #tpu.dot_dimension_numbers<[1], [0], [0], [1], [0, 0, 1, 1], [], []>} : vector<1x16xbf16>, vector<16x512xbf16>, vector<1x512xf32> -> vector<1x512xf32>
    %129 = arith.addf %126, %128 : vector<1x512xf32>
    %130 = vector.extract_strided_slice %129 {offsets = [0, 0], sizes = [1, 384], strides = [1, 1]} : vector<1x512xf32> to vector<1x384xf32>
    %131 = arith.negf %130 : vector<1x384xf32>
    %132 = math.exp %131 : vector<1x384xf32>
    %cst_49 = arith.constant 1.000000e+00 : f32
    %133 = vector.broadcast %cst_49 : f32 to vector<1x384xf32>
    %134 = arith.addf %133, %132 : vector<1x384xf32>
    %135 = arith.divf %133, %134 : vector<1x384xf32>
    %136 = vector.extract_strided_slice %135 {offsets = [0, 0], sizes = [1, 128], strides = [1, 1]} : vector<1x384xf32> to vector<1x128xf32>
    %137 = vector.extract_strided_slice %135 {offsets = [0, 128], sizes = [1, 128], strides = [1, 1]} : vector<1x384xf32> to vector<1x128xf32>
    %138 = vector.extract_strided_slice %135 {offsets = [0, 256], sizes = [1, 128], strides = [1, 1]} : vector<1x384xf32> to vector<1x128xf32>
    %139 = vector.extract_strided_slice %129 {offsets = [0, 384], sizes = [1, 128], strides = [1, 1]} : vector<1x512xf32> to vector<1x128xf32>
    %140 = math.tanh %139 : vector<1x128xf32>
    %141 = arith.mulf %137, %120 : vector<1x128xf32>
    %142 = arith.mulf %136, %140 : vector<1x128xf32>
    %143 = arith.addf %141, %142 : vector<1x128xf32>
    %144 = math.tanh %143 : vector<1x128xf32>
    %145 = arith.mulf %138, %144 : vector<1x128xf32>
    %c5_50 = arith.constant 5 : index
    %c0_51 = arith.constant 0 : index
    %146 = vector.load %arg4[%c5_50, %c0_51] : memref<8x128xf32, #tpu.memory_space<vmem>>, vector<1x128xf32>
    tpu.vector_store %arg4[%c5_50, %c0_51], %145 {strides = array<i32>} : memref<8x128xf32, #tpu.memory_space<vmem>>, vector<1x128xf32>,
    %147 = vector.extract_strided_slice %145 {offsets = [0, 0], sizes = [1, 16], strides = [1, 1]} : vector<1x128xf32> to vector<1x16xf32>
    %148 = arith.truncf %147 : vector<1x16xf32> to vector<1x16xbf16>
    %c6 = arith.constant 6 : index
    %c0_52 = arith.constant 0 : index
    %149 = vector.load %arg7[%c6, %c0_52] : memref<8x512xf32, #tpu.memory_space<vmem>>, vector<1x512xf32>
    %c0_53 = arith.constant 0 : index
    %c0_54 = arith.constant 0 : index
    %150 = vector.load %arg8[%c0_53, %c0_54] : memref<16x512xbf16, #tpu.memory_space<vmem>>, vector<16x512xbf16>
    %cst_55 = arith.constant dense<0.000000e+00> : vector<1x512xf32>
    %151 = tpu.matmul %148, %150, %cst_55 {dimension_numbers = #tpu.dot_dimension_numbers<[1], [0], [0], [1], [0, 0, 1, 1], [], []>} : vector<1x16xbf16>, vector<16x512xbf16>, vector<1x512xf32> -> vector<1x512xf32>
    %152 = arith.addf %149, %151 : vector<1x512xf32>
    %153 = vector.extract_strided_slice %152 {offsets = [0, 0], sizes = [1, 384], strides = [1, 1]} : vector<1x512xf32> to vector<1x384xf32>
    %154 = arith.negf %153 : vector<1x384xf32>
    %155 = math.exp %154 : vector<1x384xf32>
    %cst_56 = arith.constant 1.000000e+00 : f32
    %156 = vector.broadcast %cst_56 : f32 to vector<1x384xf32>
    %157 = arith.addf %156, %155 : vector<1x384xf32>
    %158 = arith.divf %156, %157 : vector<1x384xf32>
    %159 = vector.extract_strided_slice %158 {offsets = [0, 0], sizes = [1, 128], strides = [1, 1]} : vector<1x384xf32> to vector<1x128xf32>
    %160 = vector.extract_strided_slice %158 {offsets = [0, 128], sizes = [1, 128], strides = [1, 1]} : vector<1x384xf32> to vector<1x128xf32>
    %161 = vector.extract_strided_slice %158 {offsets = [0, 256], sizes = [1, 128], strides = [1, 1]} : vector<1x384xf32> to vector<1x128xf32>
    %162 = vector.extract_strided_slice %152 {offsets = [0, 384], sizes = [1, 128], strides = [1, 1]} : vector<1x512xf32> to vector<1x128xf32>
    %163 = math.tanh %162 : vector<1x128xf32>
    %164 = arith.mulf %160, %143 : vector<1x128xf32>
    %165 = arith.mulf %159, %163 : vector<1x128xf32>
    %166 = arith.addf %164, %165 : vector<1x128xf32>
    %167 = math.tanh %166 : vector<1x128xf32>
    %168 = arith.mulf %161, %167 : vector<1x128xf32>
    %c6_57 = arith.constant 6 : index
    %c0_58 = arith.constant 0 : index
    %169 = vector.load %arg4[%c6_57, %c0_58] : memref<8x128xf32, #tpu.memory_space<vmem>>, vector<1x128xf32>
    tpu.vector_store %arg4[%c6_57, %c0_58], %168 {strides = array<i32>} : memref<8x128xf32, #tpu.memory_space<vmem>>, vector<1x128xf32>,
    %170 = vector.extract_strided_slice %168 {offsets = [0, 0], sizes = [1, 16], strides = [1, 1]} : vector<1x128xf32> to vector<1x16xf32>
    %171 = arith.truncf %170 : vector<1x16xf32> to vector<1x16xbf16>
    %c7 = arith.constant 7 : index
    %c0_59 = arith.constant 0 : index
    %172 = vector.load %arg7[%c7, %c0_59] : memref<8x512xf32, #tpu.memory_space<vmem>>, vector<1x512xf32>
    %c0_60 = arith.constant 0 : index
    %c0_61 = arith.constant 0 : index
    %173 = vector.load %arg8[%c0_60, %c0_61] : memref<16x512xbf16, #tpu.memory_space<vmem>>, vector<16x512xbf16>
    %cst_62 = arith.constant dense<0.000000e+00> : vector<1x512xf32>
    %174 = tpu.matmul %171, %173, %cst_62 {dimension_numbers = #tpu.dot_dimension_numbers<[1], [0], [0], [1], [0, 0, 1, 1], [], []>} : vector<1x16xbf16>, vector<16x512xbf16>, vector<1x512xf32> -> vector<1x512xf32>
    %175 = arith.addf %172, %174 : vector<1x512xf32>
    %176 = vector.extract_strided_slice %175 {offsets = [0, 0], sizes = [1, 384], strides = [1, 1]} : vector<1x512xf32> to vector<1x384xf32>
    %177 = arith.negf %176 : vector<1x384xf32>
    %178 = math.exp %177 : vector<1x384xf32>
    %cst_63 = arith.constant 1.000000e+00 : f32
    %179 = vector.broadcast %cst_63 : f32 to vector<1x384xf32>
    %180 = arith.addf %179, %178 : vector<1x384xf32>
    %181 = arith.divf %179, %180 : vector<1x384xf32>
    %182 = vector.extract_strided_slice %181 {offsets = [0, 0], sizes = [1, 128], strides = [1, 1]} : vector<1x384xf32> to vector<1x128xf32>
    %183 = vector.extract_strided_slice %181 {offsets = [0, 128], sizes = [1, 128], strides = [1, 1]} : vector<1x384xf32> to vector<1x128xf32>
    %184 = vector.extract_strided_slice %181 {offsets = [0, 256], sizes = [1, 128], strides = [1, 1]} : vector<1x384xf32> to vector<1x128xf32>
    %185 = vector.extract_strided_slice %175 {offsets = [0, 384], sizes = [1, 128], strides = [1, 1]} : vector<1x512xf32> to vector<1x128xf32>
    %186 = math.tanh %185 : vector<1x128xf32>
    %187 = arith.mulf %183, %166 : vector<1x128xf32>
    %188 = arith.mulf %182, %186 : vector<1x128xf32>
    %189 = arith.addf %187, %188 : vector<1x128xf32>
    %190 = math.tanh %189 : vector<1x128xf32>
    %191 = arith.mulf %184, %190 : vector<1x128xf32>
    %c7_64 = arith.constant 7 : index
    %c0_65 = arith.constant 0 : index
    %192 = vector.load %arg4[%c7_64, %c0_65] : memref<8x128xf32, #tpu.memory_space<vmem>>, vector<1x128xf32>
    tpu.vector_store %arg4[%c7_64, %c0_65], %191 {strides = array<i32>} : memref<8x128xf32, #tpu.memory_space<vmem>>, vector<1x128xf32>,
    %c0_66 = arith.constant 0 : index
    %c0_67 = arith.constant 0 : index
    %193 = vector.load %arg5[%c0_66, %c0_67] : memref<1x128xf32, #tpu.memory_space<vmem>>, vector<1x128xf32>
    tpu.vector_store %arg5[%c0_66, %c0_67], %191 {strides = array<i32>} : memref<1x128xf32, #tpu.memory_space<vmem>>, vector<1x128xf32>,
    %c0_68 = arith.constant 0 : index
    %c0_69 = arith.constant 0 : index
    %194 = vector.load %arg6[%c0_68, %c0_69] : memref<1x128xf32, #tpu.memory_space<vmem>>, vector<1x128xf32>
    tpu.vector_store %arg6[%c0_68, %c0_69], %189 {strides = array<i32>} : memref<1x128xf32, #tpu.memory_space<vmem>>, vector<1x128xf32>,
    return
  }
}

</mosaic_0001>

<llo_original>
// kernel: _lstm_forward.1
$region0: #{_lstm_forward.1}
  #allocation0 [shape = 'u32[]', space=smem, size = 0x4, offset = 0x4, fixed_abs, tag = 'smem constant byte address 0x4 - core index']
  #allocation1 [shape = 'u32[72,128]{1,0:T(1,128)}', space=vmem, size = 0x9000, scoped, tag = 'internal scratch']
  #allocation2 [shape = 'f32[8,512]{1,0:T(8,128)}', space=vmem, size = 0x4000, scoped, tag = 'scratch operand']
  #allocation3 [shape = 'bf16[16,512]{1,0:T(8,128)(2,1)}', space=vmem, size = 0x4000, scoped, tag = 'scratch operand']
  #allocation4 [shape = 's32[1]{0}', space=sflag, size = 0x4, scoped, tag = 'scratch operand']
  #allocation15 [shape = 's32[]', space=sflag, size = 0x4, offset = 0, fixed_abs, tag = 'sflag constant byte address 0x0 - dummy sync flag']
  #allocation16 [shape = 's32[]', space=sflag, size = 0x4, offset = 0, fixed_abs, tag = 'sflag constant byte address 0x0 - dummy sync flag']
  #allocation17 [shape = 'u32[]', space=smem, size = 0x4, offset = 0x44, fixed_abs, tag = 'smem constant byte address 0x44 - assertion arg 0']
  #allocation18 [shape = 'u32[]', space=smem, size = 0x4, offset = 0x48, fixed_abs, tag = 'smem constant byte address 0x48 - assertion arg 1']
  %s0 = inlined_call_operand.hbm [shape: f32[8,64], index: 0, kind: input, shape index: {}]
  %s1 = inlined_call_operand.hbm [shape: f32[64,512], index: 1, kind: input, shape index: {}]
  %s2 = inlined_call_operand.hbm [shape: bf16[16,512], index: 2, kind: input, shape index: {}]
  %s3 = inlined_call_operand.hbm [shape: f32[1,512], index: 3, kind: input, shape index: {}]
  %s4 = inlined_call_operand.hbm [shape: f32[8,128], index: 4, kind: output, shape index: {0}]
  %s5 = inlined_call_operand.hbm [shape: f32[1,128], index: 5, kind: output, shape index: {1}]
  %s6 = inlined_call_operand.hbm [shape: f32[1,128], index: 6, kind: output, shape index: {2}]
  %7 = xla_tuple %s4, %s5, %s6
  %s8 = sld [smem:[#allocation0]]
  $region54: #{_lstm_forward.1} parent=0
    _
  %s10 = ssub.s32 1, %s8
  %s11 = scalar_select 0, %s10, %s8
  $region1: #{_lstm_forward.1} parent=0
    #allocation5 [shape = 'u8[4096]{0}', space=vmem, size = 0x1000, scoped, tag = 'input window, operand 0, single buffered']
    #allocation6 [shape = 's32[1]{0}', space=sflag, size = 0x4, scoped, tag = 'scoped memory for _lstm_forward.1']
    #allocation7 [shape = 's32[1]{0}', space=sflag, size = 0x4, scoped, tag = 'scoped memory for _lstm_forward.1']
    #allocation8 [shape = 'u8[131072]{0}', space=vmem, size = 0x20000, scoped, tag = 'input window, operand 1, single buffered']
    #allocation9 [shape = 's32[1]{0}', space=sflag, size = 0x4, scoped, tag = 'scoped memory for _lstm_forward.1']
    #allocation10 [shape = 'u8[2048]{0}', space=vmem, size = 0x800, scoped, tag = 'input window, operand 3, single buffered']
    #allocation11 [shape = 'u8[4096]{0}', space=vmem, size = 0x1000, scoped, tag = 'output window, operand 0, single buffered']
    #allocation12 [shape = 'u8[512]{0}', space=vmem, size = 0x400, scoped, tag = 'output window, operand 1, single buffered']
    #allocation13 [shape = 's32[1]{0}', space=sflag, size = 0x4, scoped, tag = 'scoped memory for _lstm_forward.1']
    #allocation14 [shape = 'u8[512]{0}', space=vmem, size = 0x400, scoped, tag = 'output window, operand 2, single buffered']
    %12 = vsyncpa [#allocation6], 0
    %13 = vsyncpa [#allocation9], 0
    %14 = vsyncpa [#allocation7], 0
    %15 = vsyncpa [#allocation13], 0
    // Predicated region
    $region2: #{_lstm_forward.1} parent=1 // pred_check
      _
    $region3: #{_lstm_forward.1} parent=1 // pred_check_branch
      %17 = sbr.rel (0) target = $region5
    $region4: #{_lstm_forward.1} parent=1 // pred_region
      %19 = vsyncadd [#allocation6], 0
      %s21 = sshll.u32 %s0, 4
      %s22 = int_to_ptr.hbm [resolvable:$true] %s21
      %s23 = sshll.u32 [#allocation5], 4
      %s24 = int_to_ptr.vmem [resolvable:$true] %s23
      %26 = dma.hbm_to_vmem [thread:$0]  %s22, 128, %s24, [#allocation6]
    $region5: #{_lstm_forward.1} parent=1 // pred_fallthru
      _
    // Predicated region
    $region6: #{_lstm_forward.1} parent=1 // pred_check
      _
    $region7: #{_lstm_forward.1} parent=1 // pred_check_branch
      %28 = sbr.rel (0) target = $region9
    $region8: #{_lstm_forward.1} parent=1 // pred_region
      %30 = vsyncadd [#allocation9], 0
      %s31 = sshll.u32 %s1, 4
      %s32 = int_to_ptr.hbm [resolvable:$true] %s31
      %s33 = sshll.u32 [#allocation8], 4
      %s34 = int_to_ptr.vmem [resolvable:$true] %s33
      %39 = dma.hbm_to_vmem [thread:$0]  %s32, 4096, %s34, [#allocation9], 512, 512, 32
    $region9: #{_lstm_forward.1} parent=1 // pred_fallthru
      _
    // Predicated region
    $region10: #{_lstm_forward.1} parent=1 // pred_check
      _
    $region11: #{_lstm_forward.1} parent=1 // pred_check_branch
      %41 = sbr.rel (0) target = $region13
    $region12: #{_lstm_forward.1} parent=1 // pred_region
      %43 = vsyncadd [#allocation9], 0
      %s45 = sshll.u32 %s3, 4
      %s46 = int_to_ptr.hbm [resolvable:$true] %s45
      %s47 = sshll.u32 [#allocation10], 4
      %s48 = int_to_ptr.vmem [resolvable:$true] %s47
      %50 = dma.hbm_to_vmem [thread:$0]  %s46, 64, %s48, [#allocation9]
    $region13: #{_lstm_forward.1} parent=1 // pred_fallthru
      _
    // Predicated region
    $region14: #{_lstm_forward.1} parent=1 // pred_check
      _
    $region15: #{_lstm_forward.1} parent=1 // pred_check_branch
      %52 = sbr.rel (0) target = $region17
    $region16: #{_lstm_forward.1} parent=1 // pred_region
      %54 = dma.done [#allocation6], 128
    $region17: #{_lstm_forward.1} parent=1 // pred_fallthru
      _
    // Predicated region
    $region18: #{_lstm_forward.1} parent=1 // pred_check
      _
    $region19: #{_lstm_forward.1} parent=1 // pred_check_branch
      %56 = sbr.rel (0) target = $region21
    $region20: #{_lstm_forward.1} parent=1 // pred_region
      %58 = dma.done [#allocation9], 4096
    $region21: #{_lstm_forward.1} parent=1 // pred_fallthru
      _
    // Predicated region
    $region22: #{_lstm_forward.1} parent=1 // pred_check
      _
    $region23: #{_lstm_forward.1} parent=1 // pred_check_branch
      %60 = sbr.rel (0) target = $region25
    $region24: #{_lstm_forward.1} parent=1 // pred_region
      %62 = dma.done [#allocation9], 64
    $region25: #{_lstm_forward.1} parent=1 // pred_fallthru
      _
    // Predicated region
    $region26: #{_lstm_forward.1} parent=1 // pred_check
      _
    $region27: #{_lstm_forward.1} parent=1 // pred_check_branch
      %65 = sbr.rel target = $region29
    $region28: #{_lstm_forward.1} parent=1 // pred_region
      %66 = sst [smem:[#allocation17]] [#allocation16]
      %67 = sst [smem:[#allocation18]] [#allocation15]
    $region29: #{_lstm_forward.1} parent=1 // pred_fallthru
      _
    %69 = shalt.err (0)
    %s71 = sshll.u32 %s2, 4
    %s72 = int_to_ptr.hbm [resolvable:$true] %s71
    %s73 = sshll.u32 [#allocation3], 4
    %s74 = int_to_ptr.vmem [resolvable:$true] %s73
    %76 = dma.hbm_to_vmem [thread:$0]  %s72, 512, %s74, [#allocation4]
    %v77 = vld [vmem:[#allocation5] sm:$0xff]
    %v78 = vld [vmem:[#allocation8] sm:$0xff]
    %v79 = vld [vmem:[#allocation8 + $0x8] sm:$0xff]
    %v80 = vld [vmem:[#allocation8 + $0x10] sm:$0xff]
    %v81 = vld [vmem:[#allocation8 + $0x18] sm:$0xff]
    %v82 = vld [vmem:[#allocation8 + $0x20] sm:$0xff]
    %v83 = vld [vmem:[#allocation8 + $0x28] sm:$0xff]
    %v84 = vld [vmem:[#allocation8 + $0x30] sm:$0xff]
    %v85 = vld [vmem:[#allocation8 + $0x38] sm:$0xff]
    %v86 = vld [vmem:[#allocation8 + $0x40] sm:$0xff]
    %v87 = vld [vmem:[#allocation8 + $0x48] sm:$0xff]
    %v88 = vld [vmem:[#allocation8 + $0x50] sm:$0xff]
    %v89 = vld [vmem:[#allocation8 + $0x58] sm:$0xff]
    %v90 = vld [vmem:[#allocation8 + $0x60] sm:$0xff]
    %v91 = vld [vmem:[#allocation8 + $0x68] sm:$0xff]
    %v92 = vld [vmem:[#allocation8 + $0x70] sm:$0xff]
    %v93 = vld [vmem:[#allocation8 + $0x78] sm:$0xff]
    %v94 = vld [vmem:[#allocation8 + $0x80] sm:$0xff]
    %v95 = vld [vmem:[#allocation8 + $0x88] sm:$0xff]
    %v96 = vld [vmem:[#allocation8 + $0x90] sm:$0xff]
    %v97 = vld [vmem:[#allocation8 + $0x98] sm:$0xff]
    %v98 = vld [vmem:[#allocation8 + $0xa0] sm:$0xff]
    %v99 = vld [vmem:[#allocation8 + $0xa8] sm:$0xff]
    %v100 = vld [vmem:[#allocation8 + $0xb0] sm:$0xff]
    %v101 = vld [vmem:[#allocation8 + $0xb8] sm:$0xff]
    %v102 = vld [vmem:[#allocation8 + $0xc0] sm:$0xff]
    %v103 = vld [vmem:[#allocation8 + $0xc8] sm:$0xff]
    %v104 = vld [vmem:[#allocation8 + $0xd0] sm:$0xff]
    %v105 = vld [vmem:[#allocation8 + $0xd8] sm:$0xff]
    %v106 = vld [vmem:[#allocation8 + $0xe0] sm:$0xff]
    %v107 = vld [vmem:[#allocation8 + $0xe8] sm:$0xff]
    %v108 = vld [vmem:[#allocation8 + $0xf0] sm:$0xff]
    %v109 = vld [vmem:[#allocation8 + $0xf8] sm:$0xff]
    %v110 = vld [vmem:[#allocation10] sm:$0xf]
    %v112 = vperm.slane %v110, 0
    %v113 = vperm.slane %v110, 1
    %v114 = vperm.slane %v110, 2
    %v115 = vperm.slane %v110, 3
    %vm120 = vcmask 523264
    %v122 = vsel %vm120, %v77, 0
    %124 = vmatpush.msra.mxu0 0.0
    %125 = vmatpush.msra.mxu0 0.0
    %126 = vmatpush.msra.mxu0 0.0
    %127 = vmatpush.msra.mxu0 0.0
    %128 = vmatpush.msra.mxu0 0.0
    %129 = vmatpush.msra.mxu0 0.0
    %130 = vmatpush.msra.mxu0 0.0
    %131 = vmatpush.msra.mxu0 0.0
    %132 = vmatpush.msra.mxu0 %v106
    %133 = vmatpush.msra.mxu0 %v102
    %134 = vmatpush.msra.mxu0 %v98
    %135 = vmatpush.msra.mxu0 %v94
    %136 = vmatpush.msra.mxu0 %v90
    %137 = vmatpush.msra.mxu0 %v86
    %138 = vmatpush.msra.mxu0 %v82
    %139 = vmatpush.msra.mxu0 %v78
    %140 = vmatmul.f32.gmra.mxu0 %v122
    %v141 = vpop.f32.mrf.mxu0
    %v142 = vadd.f32 %v112, %v141
    %143 = vdwg.mxu0
    %144 = vmatpush.msra.mxu0 0.0
    %145 = vmatpush.msra.mxu0 0.0
    %146 = vmatpush.msra.mxu0 0.0
    %147 = vmatpush.msra.mxu0 0.0
    %148 = vmatpush.msra.mxu0 0.0
    %149 = vmatpush.msra.mxu0 0.0
    %150 = vmatpush.msra.mxu0 0.0
    %151 = vmatpush.msra.mxu0 0.0
    %152 = vmatpush.msra.mxu0 %v107
    %153 = vmatpush.msra.mxu0 %v103
    %154 = vmatpush.msra.mxu0 %v99
    %155 = vmatpush.msra.mxu0 %v95
    %156 = vmatpush.msra.mxu0 %v91
    %157 = vmatpush.msra.mxu0 %v87
    %158 = vmatpush.msra.mxu0 %v83
    %159 = vmatpush.msra.mxu0 %v79
    %160 = vmatmul.f32.gmra.mxu0 %v122
    %v161 = vpop.f32.mrf.mxu0
    %v162 = vadd.f32 %v113, %v161
    %163 = vdwg.mxu0
    %164 = vmatpush.msra.mxu0 0.0
    %165 = vmatpush.msra.mxu0 0.0
    %166 = vmatpush.msra.mxu0 0.0
    %167 = vmatpush.msra.mxu0 0.0
    %168 = vmatpush.msra.mxu0 0.0
    %169 = vmatpush.msra.mxu0 0.0
    %170 = vmatpush.msra.mxu0 0.0
    %171 = vmatpush.msra.mxu0 0.0
    %172 = vmatpush.msra.mxu0 %v108
    %173 = vmatpush.msra.mxu0 %v104
    %174 = vmatpush.msra.mxu0 %v100
    %175 = vmatpush.msra.mxu0 %v96
    %176 = vmatpush.msra.mxu0 %v92
    %177 = vmatpush.msra.mxu0 %v88
    %178 = vmatpush.msra.mxu0 %v84
    %179 = vmatpush.msra.mxu0 %v80
    %180 = vmatmul.f32.gmra.mxu0 %v122
    %v181 = vpop.f32.mrf.mxu0
    %v182 = vadd.f32 %v114, %v181
    %183 = vdwg.mxu0
    %184 = vmatpush.msra.mxu0 0.0
    %185 = vmatpush.msra.mxu0 0.0
    %186 = vmatpush.msra.mxu0 0.0
    %187 = vmatpush.msra.mxu0 0.0
    %188 = vmatpush.msra.mxu0 0.0
    %189 = vmatpush.msra.mxu0 0.0
    %190 = vmatpush.msra.mxu0 0.0
    %191 = vmatpush.msra.mxu0 0.0
    %192 = vmatpush.msra.mxu0 %v109
    %193 = vmatpush.msra.mxu0 %v105
    %194 = vmatpush.msra.mxu0 %v101
    %195 = vmatpush.msra.mxu0 %v97
    %196 = vmatpush.msra.mxu0 %v93
    %197 = vmatpush.msra.mxu0 %v89
    %198 = vmatpush.msra.mxu0 %v85
    %199 = vmatpush.msra.mxu0 %v81
    %200 = vmatmul.f32.gmra.mxu0 %v122
    %v201 = vpop.f32.mrf.mxu0
    %v202 = vadd.f32 %v115, %v201
    %203 = vdwg.mxu0
    %204 = vst [vmem:[#allocation2] sm:$0xff] %v142
    %205 = vst [vmem:[#allocation2 + $0x8] sm:$0xff] %v162
    %206 = vst [vmem:[#allocation2 + $0x10] sm:$0xff] %v182
    %207 = vst [vmem:[#allocation2 + $0x18] sm:$0xff] %v202
    %s208 = smul.u32 4, 2
    %s209 = smul.u32 %s208, 4
    %s210 = sshll.u32 %s209, 4
    %211 = dma.done [#allocation4], %s210
    %v212 = vld [vmem:[#allocation2] ss:$8 sm:$0xf]
    %v213 = vld [vmem:[#allocation3] sm:$0xff]
    %v214 = vld [vmem:[#allocation3 + $0x8] sm:$0xff]
    %v215 = vld [vmem:[#allocation3 + $0x10] sm:$0xff]
    %v216 = vld [vmem:[#allocation3 + $0x18] sm:$0xff]
    %v221 = vunpack.c.l.b16 %v213
    %v222 = vunpack.c.h.b16 %v213
    %v223 = vunpack.c.l.b16 %v214
    %v224 = vunpack.c.h.b16 %v214
    %v225 = vunpack.c.l.b16 %v215
    %v226 = vunpack.c.h.b16 %v215
    %v227 = vunpack.c.l.b16 %v216
    %v228 = vunpack.c.h.b16 %v216
    %v229 = vpack.c.b16 %v225, %v221
    %v230 = vpack.c.b16 %v226, %v222
    %v231 = vpack.c.b16 %v227, %v223
    %v232 = vpack.c.b16 %v228, %v224
    %vm237 = vcmask 130048
    %v239 = vsel %vm237, 0, 0
    %241 = vmatpush.bf16.msra.mxu0 0
    %242 = vmatpush.bf16.msra.mxu0 0
    %243 = vmatpush.bf16.msra.mxu0 0
    %244 = vmatpush.bf16.msra.mxu0 0
    %245 = vmatpush.bf16.msra.mxu0 0
    %246 = vmatpush.bf16.msra.mxu0 0
    %247 = vmatpush.bf16.msra.mxu0 0
    %248 = vmatpush.bf16.msra.mxu0 %v229
    %249 = vmatmul.bf16.gmra.mxu0 %v239
    %v250 = vpop.f32.mrf.mxu0
    %v251 = vadd.f32 0.0, %v250
    %v252 = vpop.f32.mrf.mxu0
    %253 = vdwg.mxu0
    %254 = vmatpush.bf16.msra.mxu0 0
    %255 = vmatpush.bf16.msra.mxu0 0
    %256 = vmatpush.bf16.msra.mxu0 0
    %257 = vmatpush.bf16.msra.mxu0 0
    %258 = vmatpush.bf16.msra.mxu0 0
    %259 = vmatpush.bf16.msra.mxu0 0
    %260 = vmatpush.bf16.msra.mxu0 0
    %261 = vmatpush.bf16.msra.mxu0 %v230
    %262 = vmatmul.bf16.gmra.mxu0 %v239
    %v263 = vpop.f32.mrf.mxu0
    %v264 = vadd.f32 0.0, %v263
    %v265 = vpop.f32.mrf.mxu0
    %266 = vdwg.mxu0
    %267 = vmatpush.bf16.msra.mxu0 0
    %268 = vmatpush.bf16.msra.mxu0 0
    %269 = vmatpush.bf16.msra.mxu0 0
    %270 = vmatpush.bf16.msra.mxu0 0
    %271 = vmatpush.bf16.msra.mxu0 0
    %272 = vmatpush.bf16.msra.mxu0 0
    %273 = vmatpush.bf16.msra.mxu0 0
    %274 = vmatpush.bf16.msra.mxu0 %v231
    %275 = vmatmul.bf16.gmra.mxu0 %v239
    %v276 = vpop.f32.mrf.mxu0
    %v277 = vadd.f32 0.0, %v276
    %v278 = vpop.f32.mrf.mxu0
    %279 = vdwg.mxu0
    %280 = vmatpush.bf16.msra.mxu0 0
    %281 = vmatpush.bf16.msra.mxu0 0
    %282 = vmatpush.bf16.msra.mxu0 0
    %283 = vmatpush.bf16.msra.mxu0 0
    %284 = vmatpush.bf16.msra.mxu0 0
    %285 = vmatpush.bf16.msra.mxu0 0
    %286 = vmatpush.bf16.msra.mxu0 0
    %287 = vmatpush.bf16.msra.mxu0 %v232
    %288 = vmatmul.bf16.gmra.mxu0 %v239
    %v289 = vpop.f32.mrf.mxu0
    %v290 = vadd.f32 0.0, %v289
    %v291 = vpop.f32.mrf.mxu0
    %292 = vdwg.mxu0
    %v297 = vrot.slane %v264, 7
    %v298 = vrot.slane %v277, 6
    %v299 = vrot.slane %v290, 5
    %vm300 = vcmask 1040384
    %v301 = vsel %vm300, %v251, %v297
    %vm302 = vcmask 1042434
    %v303 = vsel %vm302, %v298, %v299
    %vm304 = vcmask 1041408
    %v305 = vsel %vm304, %v301, %v303
    %v307 = vadd.f32 %v212, %v305
    %v308 = vxor.u32 %v307, 2147483648
    %v309 = vmul.f32 %v308, 1.442695
    %v310 = vpow.pop %v309
    %v311 = vadd.f32 %v310, 1.0
    %v312 = vrcp.pop %v311
    %v313 = vmul.f32 %v311, %v312
    %v314 = vsub.f32 1.0, %v313
    %v315 = vmul.f32 %v312, %v314
    %v316 = vadd.f32 %v312, %v315
    %vm317 = vweird.f32 %v311
    %vm318 = vweird.f32 %v312
    %vm319 = vmor %vm317, %vm318
    %v320 = vsel %vm319, %v312, %v316
    %v321 = vand.u32 2147483647, %v311
    %vm322 = vcmp.eq.f32.partialorder %v321, 8.507059e+37
    %v323 = vand.u32 %v311, 2147483648
    %v324 = vor.u32 1.1754944e-38, %v323
    %v325 = vsel %vm322, %v324, %v320
    %v326 = vmul.f32 1.0, %v325
    %v328 = vrot.slane %v307, 3
    %v330 = vtanh.pop %v328
    %v332 = vrot.slane %v326, 1
    %v334 = vmul.f32 %v332, 0.0
    %v335 = vmul.f32 %v326, %v330
    %v336 = vadd.f32 %v334, %v335
    %v337 = vtanh.pop %v336
    %v338 = vrot.slane %v326, 2
    %v340 = vmul.f32 %v338, %v337
    %341 = vst [vmem:[#allocation11] sm:$0x1] %v340
    %v342 = vpack.c.bf16 %v340, %v340
    %s343 = scalar_lea.vmem [#allocation2], 1
    %v344 = vld [vmem:[%s343] ss:$8 sm:$0xf]
    %v345 = vld [vmem:[#allocation3] sm:$0xff]
    %v346 = vld [vmem:[#allocation3 + $0x8] sm:$0xff]
    %v347 = vld [vmem:[#allocation3 + $0x10] sm:$0xff]
    %v348 = vld [vmem:[#allocation3 + $0x18] sm:$0xff]
    %v353 = vunpack.c.l.b16 %v345
    %v354 = vunpack.c.h.b16 %v345
    %v355 = vunpack.c.l.b16 %v346
    %v356 = vunpack.c.h.b16 %v346
    %v357 = vunpack.c.l.b16 %v347
    %v358 = vunpack.c.h.b16 %v347
    %v359 = vunpack.c.l.b16 %v348
    %v360 = vunpack.c.h.b16 %v348
    %v361 = vpack.c.b16 %v357, %v353
    %v362 = vpack.c.b16 %v358, %v354
    %v363 = vpack.c.b16 %v359, %v355
    %v364 = vpack.c.b16 %v360, %v356
    %v370 = vsel %vm237, %v342, 0
    %372 = vmatpush.bf16.msra.mxu0 0
    %373 = vmatpush.bf16.msra.mxu0 0
    %374 = vmatpush.bf16.msra.mxu0 0
    %375 = vmatpush.bf16.msra.mxu0 0
    %376 = vmatpush.bf16.msra.mxu0 0
    %377 = vmatpush.bf16.msra.mxu0 0
    %378 = vmatpush.bf16.msra.mxu0 0
    %379 = vmatpush.bf16.msra.mxu0 %v361
    %380 = vmatmul.bf16.gmra.mxu0 %v370
    %v381 = vpop.f32.mrf.mxu0
    %v382 = vadd.f32 0.0, %v381
    %v383 = vpop.f32.mrf.mxu0
    %384 = vdwg.mxu0
    %385 = vmatpush.bf16.msra.mxu0 0
    %386 = vmatpush.bf16.msra.mxu0 0
    %387 = vmatpush.bf16.msra.mxu0 0
    %388 = vmatpush.bf16.msra.mxu0 0
    %389 = vmatpush.bf16.msra.mxu0 0
    %390 = vmatpush.bf16.msra.mxu0 0
    %391 = vmatpush.bf16.msra.mxu0 0
    %392 = vmatpush.bf16.msra.mxu0 %v362
    %393 = vmatmul.bf16.gmra.mxu0 %v370
    %v394 = vpop.f32.mrf.mxu0
    %v395 = vadd.f32 0.0, %v394
    %v396 = vpop.f32.mrf.mxu0
    %397 = vdwg.mxu0
    %398 = vmatpush.bf16.msra.mxu0 0
    %399 = vmatpush.bf16.msra.mxu0 0
    %400 = vmatpush.bf16.msra.mxu0 0
    %401 = vmatpush.bf16.msra.mxu0 0
    %402 = vmatpush.bf16.msra.mxu0 0
    %403 = vmatpush.bf16.msra.mxu0 0
    %404 = vmatpush.bf16.msra.mxu0 0
    %405 = vmatpush.bf16.msra.mxu0 %v363
    %406 = vmatmul.bf16.gmra.mxu0 %v370
    %v407 = vpop.f32.mrf.mxu0
    %v408 = vadd.f32 0.0, %v407
    %v409 = vpop.f32.mrf.mxu0
    %410 = vdwg.mxu0
    %411 = vmatpush.bf16.msra.mxu0 0
    %412 = vmatpush.bf16.msra.mxu0 0
    %413 = vmatpush.bf16.msra.mxu0 0
    %414 = vmatpush.bf16.msra.mxu0 0
    %415 = vmatpush.bf16.msra.mxu0 0
    %416 = vmatpush.bf16.msra.mxu0 0
    %417 = vmatpush.bf16.msra.mxu0 0
    %418 = vmatpush.bf16.msra.mxu0 %v364
    %419 = vmatmul.bf16.gmra.mxu0 %v370
    %v420 = vpop.f32.mrf.mxu0
    %v421 = vadd.f32 0.0, %v420
    %v422 = vpop.f32.mrf.mxu0
    %423 = vdwg.mxu0
    %v428 = vrot.slane %v395, 7
    %v429 = vrot.slane %v408, 6
    %v430 = vrot.slane %v421, 5
    %v431 = vsel %vm300, %v382, %v428
    %v432 = vsel %vm302, %v429, %v430
    %v433 = vsel %vm304, %v431, %v432
    %v435 = vadd.f32 %v344, %v433
    %v436 = vxor.u32 %v435, 2147483648
    %v437 = vmul.f32 %v436, 1.442695
    %v438 = vpow.pop %v437
    %v439 = vadd.f32 %v438, 1.0
    %v440 = vrcp.pop %v439
    %v441 = vmul.f32 %v439, %v440
    %v442 = vsub.f32 1.0, %v441
    %v443 = vmul.f32 %v440, %v442
    %v444 = vadd.f32 %v440, %v443
    %vm445 = vweird.f32 %v439
    %vm446 = vweird.f32 %v440
    %vm447 = vmor %vm445, %vm446
    %v448 = vsel %vm447, %v440, %v444
    %v449 = vand.u32 2147483647, %v439
    %vm450 = vcmp.eq.f32.partialorder %v449, 8.507059e+37
    %v451 = vand.u32 %v439, 2147483648
    %v452 = vor.u32 1.1754944e-38, %v451
    %v453 = vsel %vm450, %v452, %v448
    %v454 = vmul.f32 1.0, %v453
    %v456 = vrot.slane %v435, 3
    %v458 = vtanh.pop %v456
    %v460 = vrot.slane %v454, 1
    %v462 = vmul.f32 %v460, %v336
    %v463 = vmul.f32 %v454, %v458
    %v464 = vadd.f32 %v462, %v463
    %v465 = vtanh.pop %v464
    %v466 = vrot.slane %v454, 2
    %v468 = vmul.f32 %v466, %v465
    %469 = vst [vmem:[#allocation11 + $0x1] sm:$0x1] %v468
    %v470 = vpack.c.bf16 %v468, %v468
    %s471 = scalar_lea.vmem [#allocation2], 2
    %v472 = vld [vmem:[%s471] ss:$8 sm:$0xf]
    %v473 = vld [vmem:[#allocation3] sm:$0xff]
    %v474 = vld [vmem:[#allocation3 + $0x8] sm:$0xff]
    %v475 = vld [vmem:[#allocation3 + $0x10] sm:$0xff]
    %v476 = vld [vmem:[#allocation3 + $0x18] sm:$0xff]
    %v481 = vunpack.c.l.b16 %v473
    %v482 = vunpack.c.h.b16 %v473
    %v483 = vunpack.c.l.b16 %v474
    %v484 = vunpack.c.h.b16 %v474
    %v485 = vunpack.c.l.b16 %v475
    %v486 = vunpack.c.h.b16 %v475
    %v487 = vunpack.c.l.b16 %v476
    %v488 = vunpack.c.h.b16 %v476
    %v489 = vpack.c.b16 %v485, %v481
    %v490 = vpack.c.b16 %v486, %v482
    %v491 = vpack.c.b16 %v487, %v483
    %v492 = vpack.c.b16 %v488, %v484
    %v498 = vsel %vm237, %v470, 0
    %500 = vmatpush.bf16.msra.mxu0 0
    %501 = vmatpush.bf16.msra.mxu0 0
    %502 = vmatpush.bf16.msra.mxu0 0
    %503 = vmatpush.bf16.msra.mxu0 0
    %504 = vmatpush.bf16.msra.mxu0 0
    %505 = vmatpush.bf16.msra.mxu0 0
    %506 = vmatpush.bf16.msra.mxu0 0
    %507 = vmatpush.bf16.msra.mxu0 %v489
    %508 = vmatmul.bf16.gmra.mxu0 %v498
    %v509 = vpop.f32.mrf.mxu0
    %v510 = vadd.f32 0.0, %v509
    %v511 = vpop.f32.mrf.mxu0
    %512 = vdwg.mxu0
    %513 = vmatpush.bf16.msra.mxu0 0
    %514 = vmatpush.bf16.msra.mxu0 0
    %515 = vmatpush.bf16.msra.mxu0 0
    %516 = vmatpush.bf16.msra.mxu0 0
    %517 = vmatpush.bf16.msra.mxu0 0
    %518 = vmatpush.bf16.msra.mxu0 0
    %519 = vmatpush.bf16.msra.mxu0 0
    %520 = vmatpush.bf16.msra.mxu0 %v490
    %521 = vmatmul.bf16.gmra.mxu0 %v498
    %v522 = vpop.f32.mrf.mxu0
    %v523 = vadd.f32 0.0, %v522
    %v524 = vpop.f32.mrf.mxu0
    %525 = vdwg.mxu0
    %526 = vmatpush.bf16.msra.mxu0 0
    %527 = vmatpush.bf16.msra.mxu0 0
    %528 = vmatpush.bf16.msra.mxu0 0
    %529 = vmatpush.bf16.msra.mxu0 0
    %530 = vmatpush.bf16.msra.mxu0 0
    %531 = vmatpush.bf16.msra.mxu0 0
    %532 = vmatpush.bf16.msra.mxu0 0
    %533 = vmatpush.bf16.msra.mxu0 %v491
    %534 = vmatmul.bf16.gmra.mxu0 %v498
    %v535 = vpop.f32.mrf.mxu0
    %v536 = vadd.f32 0.0, %v535
    %v537 = vpop.f32.mrf.mxu0
    %538 = vdwg.mxu0
    %539 = vmatpush.bf16.msra.mxu0 0
    %540 = vmatpush.bf16.msra.mxu0 0
    %541 = vmatpush.bf16.msra.mxu0 0
    %542 = vmatpush.bf16.msra.mxu0 0
    %543 = vmatpush.bf16.msra.mxu0 0
    %544 = vmatpush.bf16.msra.mxu0 0
    %545 = vmatpush.bf16.msra.mxu0 0
    %546 = vmatpush.bf16.msra.mxu0 %v492
    %547 = vmatmul.bf16.gmra.mxu0 %v498
    %v548 = vpop.f32.mrf.mxu0
    %v549 = vadd.f32 0.0, %v548
    %v550 = vpop.f32.mrf.mxu0
    %551 = vdwg.mxu0
    %v556 = vrot.slane %v523, 7
    %v557 = vrot.slane %v536, 6
    %v558 = vrot.slane %v549, 5
    %v559 = vsel %vm300, %v510, %v556
    %v560 = vsel %vm302, %v557, %v558
    %v561 = vsel %vm304, %v559, %v560
    %v563 = vadd.f32 %v472, %v561
    %v564 = vxor.u32 %v563, 2147483648
    %v565 = vmul.f32 %v564, 1.442695
    %v566 = vpow.pop %v565
    %v567 = vadd.f32 %v566, 1.0
    %v568 = vrcp.pop %v567
    %v569 = vmul.f32 %v567, %v568
    %v570 = vsub.f32 1.0, %v569
    %v571 = vmul.f32 %v568, %v570
    %v572 = vadd.f32 %v568, %v571
    %vm573 = vweird.f32 %v567
    %vm574 = vweird.f32 %v568
    %vm575 = vmor %vm573, %vm574
    %v576 = vsel %vm575, %v568, %v572
    %v577 = vand.u32 2147483647, %v567
    %vm578 = vcmp.eq.f32.partialorder %v577, 8.507059e+37
    %v579 = vand.u32 %v567, 2147483648
    %v580 = vor.u32 1.1754944e-38, %v579
    %v581 = vsel %vm578, %v580, %v576
    %v582 = vmul.f32 1.0, %v581
    %v584 = vrot.slane %v563, 3
    %v586 = vtanh.pop %v584
    %v588 = vrot.slane %v582, 1
    %v590 = vmul.f32 %v588, %v464
    %v591 = vmul.f32 %v582, %v586
    %v592 = vadd.f32 %v590, %v591
    %v593 = vtanh.pop %v592
    %v594 = vrot.slane %v582, 2
    %v596 = vmul.f32 %v594, %v593
    %597 = vst [vmem:[#allocation11 + $0x2] sm:$0x1] %v596
    %v598 = vpack.c.bf16 %v596, %v596
    %s599 = scalar_lea.vmem [#allocation2], 3
    %v600 = vld [vmem:[%s599] ss:$8 sm:$0xf]
    %v601 = vld [vmem:[#allocation3] sm:$0xff]
    %v602 = vld [vmem:[#allocation3 + $0x8] sm:$0xff]
    %v603 = vld [vmem:[#allocation3 + $0x10] sm:$0xff]
    %v604 = vld [vmem:[#allocation3 + $0x18] sm:$0xff]
    %v609 = vunpack.c.l.b16 %v601
    %v610 = vunpack.c.h.b16 %v601
    %v611 = vunpack.c.l.b16 %v602
    %v612 = vunpack.c.h.b16 %v602
    %v613 = vunpack.c.l.b16 %v603
    %v614 = vunpack.c.h.b16 %v603
    %v615 = vunpack.c.l.b16 %v604
    %v616 = vunpack.c.h.b16 %v604
    %v617 = vpack.c.b16 %v613, %v609
    %v618 = vpack.c.b16 %v614, %v610
    %v619 = vpack.c.b16 %v615, %v611
    %v620 = vpack.c.b16 %v616, %v612
    %v626 = vsel %vm237, %v598, 0
    %628 = vmatpush.bf16.msra.mxu0 0
    %629 = vmatpush.bf16.msra.mxu0 0
    %630 = vmatpush.bf16.msra.mxu0 0
    %631 = vmatpush.bf16.msra.mxu0 0
    %632 = vmatpush.bf16.msra.mxu0 0
    %633 = vmatpush.bf16.msra.mxu0 0
    %634 = vmatpush.bf16.msra.mxu0 0
    %635 = vmatpush.bf16.msra.mxu0 %v617
    %636 = vmatmul.bf16.gmra.mxu0 %v626
    %v637 = vpop.f32.mrf.mxu0
    %v638 = vadd.f32 0.0, %v637
    %v639 = vpop.f32.mrf.mxu0
    %640 = vdwg.mxu0
    %641 = vmatpush.bf16.msra.mxu0 0
    %642 = vmatpush.bf16.msra.mxu0 0
    %643 = vmatpush.bf16.msra.mxu0 0
    %644 = vmatpush.bf16.msra.mxu0 0
    %645 = vmatpush.bf16.msra.mxu0 0
    %646 = vmatpush.bf16.msra.mxu0 0
    %647 = vmatpush.bf16.msra.mxu0 0
    %648 = vmatpush.bf16.msra.mxu0 %v618
    %649 = vmatmul.bf16.gmra.mxu0 %v626
    %v650 = vpop.f32.mrf.mxu0
    %v651 = vadd.f32 0.0, %v650
    %v652 = vpop.f32.mrf.mxu0
    %653 = vdwg.mxu0
    %654 = vmatpush.bf16.msra.mxu0 0
    %655 = vmatpush.bf16.msra.mxu0 0
    %656 = vmatpush.bf16.msra.mxu0 0
    %657 = vmatpush.bf16.msra.mxu0 0
    %658 = vmatpush.bf16.msra.mxu0 0
    %659 = vmatpush.bf16.msra.mxu0 0
    %660 = vmatpush.bf16.msra.mxu0 0
    %661 = vmatpush.bf16.msra.mxu0 %v619
    %662 = vmatmul.bf16.gmra.mxu0 %v626
    %v663 = vpop.f32.mrf.mxu0
    %v664 = vadd.f32 0.0, %v663
    %v665 = vpop.f32.mrf.mxu0
    %666 = vdwg.mxu0
    %667 = vmatpush.bf16.msra.mxu0 0
    %668 = vmatpush.bf16.msra.mxu0 0
    %669 = vmatpush.bf16.msra.mxu0 0
    %670 = vmatpush.bf16.msra.mxu0 0
    %671 = vmatpush.bf16.msra.mxu0 0
    %672 = vmatpush.bf16.msra.mxu0 0
    %673 = vmatpush.bf16.msra.mxu0 0
    %674 = vmatpush.bf16.msra.mxu0 %v620
    %675 = vmatmul.bf16.gmra.mxu0 %v626
    %v676 = vpop.f32.mrf.mxu0
    %v677 = vadd.f32 0.0, %v676
    %v678 = vpop.f32.mrf.mxu0
    %679 = vdwg.mxu0
    %v684 = vrot.slane %v651, 7
    %v685 = vrot.slane %v664, 6
    %v686 = vrot.slane %v677, 5
    %v687 = vsel %vm300, %v638, %v684
    %v688 = vsel %vm302, %v685, %v686
    %v689 = vsel %vm304, %v687, %v688
    %v691 = vadd.f32 %v600, %v689
    %v692 = vxor.u32 %v691, 2147483648
    %v693 = vmul.f32 %v692, 1.442695
    %v694 = vpow.pop %v693
    %v695 = vadd.f32 %v694, 1.0
    %v696 = vrcp.pop %v695
    %v697 = vmul.f32 %v695, %v696
    %v698 = vsub.f32 1.0, %v697
    %v699 = vmul.f32 %v696, %v698
    %v700 = vadd.f32 %v696, %v699
    %vm701 = vweird.f32 %v695
    %vm702 = vweird.f32 %v696
    %vm703 = vmor %vm701, %vm702
    %v704 = vsel %vm703, %v696, %v700
    %v705 = vand.u32 2147483647, %v695
    %vm706 = vcmp.eq.f32.partialorder %v705, 8.507059e+37
    %v707 = vand.u32 %v695, 2147483648
    %v708 = vor.u32 1.1754944e-38, %v707
    %v709 = vsel %vm706, %v708, %v704
    %v710 = vmul.f32 1.0, %v709
    %v712 = vrot.slane %v691, 3
    %v714 = vtanh.pop %v712
    %v716 = vrot.slane %v710, 1
    %v718 = vmul.f32 %v716, %v592
    %v719 = vmul.f32 %v710, %v714
    %v720 = vadd.f32 %v718, %v719
    %v721 = vtanh.pop %v720
    %v722 = vrot.slane %v710, 2
    %v724 = vmul.f32 %v722, %v721
    %725 = vst [vmem:[#allocation11 + $0x3] sm:$0x1] %v724
    %v726 = vpack.c.bf16 %v724, %v724
    %s727 = scalar_lea.vmem [#allocation2], 4
    %v728 = vld [vmem:[%s727] ss:$8 sm:$0xf]
    %v729 = vld [vmem:[#allocation3] sm:$0xff]
    %v730 = vld [vmem:[#allocation3 + $0x8] sm:$0xff]
    %v731 = vld [vmem:[#allocation3 + $0x10] sm:$0xff]
    %v732 = vld [vmem:[#allocation3 + $0x18] sm:$0xff]
    %v737 = vunpack.c.l.b16 %v729
    %v738 = vunpack.c.h.b16 %v729
    %v739 = vunpack.c.l.b16 %v730
    %v740 = vunpack.c.h.b16 %v730
    %v741 = vunpack.c.l.b16 %v731
    %v742 = vunpack.c.h.b16 %v731
    %v743 = vunpack.c.l.b16 %v732
    %v744 = vunpack.c.h.b16 %v732
    %v745 = vpack.c.b16 %v741, %v737
    %v746 = vpack.c.b16 %v742, %v738
    %v747 = vpack.c.b16 %v743, %v739
    %v748 = vpack.c.b16 %v744, %v740
    %v754 = vsel %vm237, %v726, 0
    %756 = vmatpush.bf16.msra.mxu0 0
    %757 = vmatpush.bf16.msra.mxu0 0
    %758 = vmatpush.bf16.msra.mxu0 0
    %759 = vmatpush.bf16.msra.mxu0 0
    %760 = vmatpush.bf16.msra.mxu0 0
    %761 = vmatpush.bf16.msra.mxu0 0
    %762 = vmatpush.bf16.msra.mxu0 0
    %763 = vmatpush.bf16.msra.mxu0 %v745
    %764 = vmatmul.bf16.gmra.mxu0 %v754
    %v765 = vpop.f32.mrf.mxu0
    %v766 = vadd.f32 0.0, %v765
    %v767 = vpop.f32.mrf.mxu0
    %768 = vdwg.mxu0
    %769 = vmatpush.bf16.msra.mxu0 0
    %770 = vmatpush.bf16.msra.mxu0 0
    %771 = vmatpush.bf16.msra.mxu0 0
    %772 = vmatpush.bf16.msra.mxu0 0
    %773 = vmatpush.bf16.msra.mxu0 0
    %774 = vmatpush.bf16.msra.mxu0 0
    %775 = vmatpush.bf16.msra.mxu0 0
    %776 = vmatpush.bf16.msra.mxu0 %v746
    %777 = vmatmul.bf16.gmra.mxu0 %v754
    %v778 = vpop.f32.mrf.mxu0
    %v779 = vadd.f32 0.0, %v778
    %v780 = vpop.f32.mrf.mxu0
    %781 = vdwg.mxu0
    %782 = vmatpush.bf16.msra.mxu0 0
    %783 = vmatpush.bf16.msra.mxu0 0
    %784 = vmatpush.bf16.msra.mxu0 0
    %785 = vmatpush.bf16.msra.mxu0 0
    %786 = vmatpush.bf16.msra.mxu0 0
    %787 = vmatpush.bf16.msra.mxu0 0
    %788 = vmatpush.bf16.msra.mxu0 0
    %789 = vmatpush.bf16.msra.mxu0 %v747
    %790 = vmatmul.bf16.gmra.mxu0 %v754
    %v791 = vpop.f32.mrf.mxu0
    %v792 = vadd.f32 0.0, %v791
    %v793 = vpop.f32.mrf.mxu0
    %794 = vdwg.mxu0
    %795 = vmatpush.bf16.msra.mxu0 0
    %796 = vmatpush.bf16.msra.mxu0 0
    %797 = vmatpush.bf16.msra.mxu0 0
    %798 = vmatpush.bf16.msra.mxu0 0
    %799 = vmatpush.bf16.msra.mxu0 0
    %800 = vmatpush.bf16.msra.mxu0 0
    %801 = vmatpush.bf16.msra.mxu0 0
    %802 = vmatpush.bf16.msra.mxu0 %v748
    %803 = vmatmul.bf16.gmra.mxu0 %v754
    %v804 = vpop.f32.mrf.mxu0
    %v805 = vadd.f32 0.0, %v804
    %v806 = vpop.f32.mrf.mxu0
    %807 = vdwg.mxu0
    %v812 = vrot.slane %v779, 7
    %v813 = vrot.slane %v792, 6
    %v814 = vrot.slane %v805, 5
    %v815 = vsel %vm300, %v766, %v812
    %v816 = vsel %vm302, %v813, %v814
    %v817 = vsel %vm304, %v815, %v816
    %v819 = vadd.f32 %v728, %v817
    %v820 = vxor.u32 %v819, 2147483648
    %v821 = vmul.f32 %v820, 1.442695
    %v822 = vpow.pop %v821
    %v823 = vadd.f32 %v822, 1.0
    %v824 = vrcp.pop %v823
    %v825 = vmul.f32 %v823, %v824
    %v826 = vsub.f32 1.0, %v825
    %v827 = vmul.f32 %v824, %v826
    %v828 = vadd.f32 %v824, %v827
    %vm829 = vweird.f32 %v823
    %vm830 = vweird.f32 %v824
    %vm831 = vmor %vm829, %vm830
    %v832 = vsel %vm831, %v824, %v828
    %v833 = vand.u32 2147483647, %v823
    %vm834 = vcmp.eq.f32.partialorder %v833, 8.507059e+37
    %v835 = vand.u32 %v823, 2147483648
    %v836 = vor.u32 1.1754944e-38, %v835
    %v837 = vsel %vm834, %v836, %v832
    %v838 = vmul.f32 1.0, %v837
    %v840 = vrot.slane %v819, 3
    %v842 = vtanh.pop %v840
    %v844 = vrot.slane %v838, 1
    %v846 = vmul.f32 %v844, %v720
    %v847 = vmul.f32 %v838, %v842
    %v848 = vadd.f32 %v846, %v847
    %v849 = vtanh.pop %v848
    %v850 = vrot.slane %v838, 2
    %v852 = vmul.f32 %v850, %v849
    %853 = vst [vmem:[#allocation11 + $0x4] sm:$0x1] %v852
    %v854 = vpack.c.bf16 %v852, %v852
    %s855 = scalar_lea.vmem [#allocation2], 5
    %v856 = vld [vmem:[%s855] ss:$8 sm:$0xf]
    %v857 = vld [vmem:[#allocation3] sm:$0xff]
    %v858 = vld [vmem:[#allocation3 + $0x8] sm:$0xff]
    %v859 = vld [vmem:[#allocation3 + $0x10] sm:$0xff]
    %v860 = vld [vmem:[#allocation3 + $0x18] sm:$0xff]
    %v865 = vunpack.c.l.b16 %v857
    %v866 = vunpack.c.h.b16 %v857
    %v867 = vunpack.c.l.b16 %v858
    %v868 = vunpack.c.h.b16 %v858
    %v869 = vunpack.c.l.b16 %v859
    %v870 = vunpack.c.h.b16 %v859
    %v871 = vunpack.c.l.b16 %v860
    %v872 = vunpack.c.h.b16 %v860
    %v873 = vpack.c.b16 %v869, %v865
    %v874 = vpack.c.b16 %v870, %v866
    %v875 = vpack.c.b16 %v871, %v867
    %v876 = vpack.c.b16 %v872, %v868
    %v882 = vsel %vm237, %v854, 0
    %884 = vmatpush.bf16.msra.mxu0 0
    %885 = vmatpush.bf16.msra.mxu0 0
    %886 = vmatpush.bf16.msra.mxu0 0
    %887 = vmatpush.bf16.msra.mxu0 0
    %888 = vmatpush.bf16.msra.mxu0 0
    %889 = vmatpush.bf16.msra.mxu0 0
    %890 = vmatpush.bf16.msra.mxu0 0
    %891 = vmatpush.bf16.msra.mxu0 %v873
    %892 = vmatmul.bf16.gmra.mxu0 %v882
    %v893 = vpop.f32.mrf.mxu0
    %v894 = vadd.f32 0.0, %v893
    %v895 = vpop.f32.mrf.mxu0
    %896 = vdwg.mxu0
    %897 = vmatpush.bf16.msra.mxu0 0
    %898 = vmatpush.bf16.msra.mxu0 0
    %899 = vmatpush.bf16.msra.mxu0 0
    %900 = vmatpush.bf16.msra.mxu0 0
    %901 = vmatpush.bf16.msra.mxu0 0
    %902 = vmatpush.bf16.msra.mxu0 0
    %903 = vmatpush.bf16.msra.mxu0 0
    %904 = vmatpush.bf16.msra.mxu0 %v874
    %905 = vmatmul.bf16.gmra.mxu0 %v882
    %v906 = vpop.f32.mrf.mxu0
    %v907 = vadd.f32 0.0, %v906
    %v908 = vpop.f32.mrf.mxu0
    %909 = vdwg.mxu0
    %910 = vmatpush.bf16.msra.mxu0 0
    %911 = vmatpush.bf16.msra.mxu0 0
    %912 = vmatpush.bf16.msra.mxu0 0
    %913 = vmatpush.bf16.msra.mxu0 0
    %914 = vmatpush.bf16.msra.mxu0 0
    %915 = vmatpush.bf16.msra.mxu0 0
    %916 = vmatpush.bf16.msra.mxu0 0
    %917 = vmatpush.bf16.msra.mxu0 %v875
    %918 = vmatmul.bf16.gmra.mxu0 %v882
    %v919 = vpop.f32.mrf.mxu0
    %v920 = vadd.f32 0.0, %v919
    %v921 = vpop.f32.mrf.mxu0
    %922 = vdwg.mxu0
    %923 = vmatpush.bf16.msra.mxu0 0
    %924 = vmatpush.bf16.msra.mxu0 0
    %925 = vmatpush.bf16.msra.mxu0 0
    %926 = vmatpush.bf16.msra.mxu0 0
    %927 = vmatpush.bf16.msra.mxu0 0
    %928 = vmatpush.bf16.msra.mxu0 0
    %929 = vmatpush.bf16.msra.mxu0 0
    %930 = vmatpush.bf16.msra.mxu0 %v876
    %931 = vmatmul.bf16.gmra.mxu0 %v882
    %v932 = vpop.f32.mrf.mxu0
    %v933 = vadd.f32 0.0, %v932
    %v934 = vpop.f32.mrf.mxu0
    %935 = vdwg.mxu0
    %v940 = vrot.slane %v907, 7
    %v941 = vrot.slane %v920, 6
    %v942 = vrot.slane %v933, 5
    %v943 = vsel %vm300, %v894, %v940
    %v944 = vsel %vm302, %v941, %v942
    %v945 = vsel %vm304, %v943, %v944
    %v947 = vadd.f32 %v856, %v945
    %v948 = vxor.u32 %v947, 2147483648
    %v949 = vmul.f32 %v948, 1.442695
    %v950 = vpow.pop %v949
    %v951 = vadd.f32 %v950, 1.0
    %v952 = vrcp.pop %v951
    %v953 = vmul.f32 %v951, %v952
    %v954 = vsub.f32 1.0, %v953
    %v955 = vmul.f32 %v952, %v954
    %v956 = vadd.f32 %v952, %v955
    %vm957 = vweird.f32 %v951
    %vm958 = vweird.f32 %v952
    %vm959 = vmor %vm957, %vm958
    %v960 = vsel %vm959, %v952, %v956
    %v961 = vand.u32 2147483647, %v951
    %vm962 = vcmp.eq.f32.partialorder %v961, 8.507059e+37
    %v963 = vand.u32 %v951, 2147483648
    %v964 = vor.u32 1.1754944e-38, %v963
    %v965 = vsel %vm962, %v964, %v960
    %v966 = vmul.f32 1.0, %v965
    %v968 = vrot.slane %v947, 3
    %v970 = vtanh.pop %v968
    %v972 = vrot.slane %v966, 1
    %v974 = vmul.f32 %v972, %v848
    %v975 = vmul.f32 %v966, %v970
    %v976 = vadd.f32 %v974, %v975
    %v977 = vtanh.pop %v976
    %v978 = vrot.slane %v966, 2
    %v980 = vmul.f32 %v978, %v977
    %981 = vst [vmem:[#allocation11 + $0x5] sm:$0x1] %v980
    %v982 = vpack.c.bf16 %v980, %v980
    %s983 = scalar_lea.vmem [#allocation2], 6
    %v984 = vld [vmem:[%s983] ss:$8 sm:$0xf]
    %v985 = vld [vmem:[#allocation3] sm:$0xff]
    %v986 = vld [vmem:[#allocation3 + $0x8] sm:$0xff]
    %v987 = vld [vmem:[#allocation3 + $0x10] sm:$0xff]
    %v988 = vld [vmem:[#allocation3 + $0x18] sm:$0xff]
    %v993 = vunpack.c.l.b16 %v985
    %v994 = vunpack.c.h.b16 %v985
    %v995 = vunpack.c.l.b16 %v986
    %v996 = vunpack.c.h.b16 %v986
    %v997 = vunpack.c.l.b16 %v987
    %v998 = vunpack.c.h.b16 %v987
    %v999 = vunpack.c.l.b16 %v988
    %v1000 = vunpack.c.h.b16 %v988
    %v1001 = vpack.c.b16 %v997, %v993
    %v1002 = vpack.c.b16 %v998, %v994
    %v1003 = vpack.c.b16 %v999, %v995
    %v1004 = vpack.c.b16 %v1000, %v996
    %v1010 = vsel %vm237, %v982, 0
    %1012 = vmatpush.bf16.msra.mxu0 0
    %1013 = vmatpush.bf16.msra.mxu0 0
    %1014 = vmatpush.bf16.msra.mxu0 0
    %1015 = vmatpush.bf16.msra.mxu0 0
    %1016 = vmatpush.bf16.msra.mxu0 0
    %1017 = vmatpush.bf16.msra.mxu0 0
    %1018 = vmatpush.bf16.msra.mxu0 0
    %1019 = vmatpush.bf16.msra.mxu0 %v1001
    %1020 = vmatmul.bf16.gmra.mxu0 %v1010
    %v1021 = vpop.f32.mrf.mxu0
    %v1022 = vadd.f32 0.0, %v1021
    %v1023 = vpop.f32.mrf.mxu0
    %1024 = vdwg.mxu0
    %1025 = vmatpush.bf16.msra.mxu0 0
    %1026 = vmatpush.bf16.msra.mxu0 0
    %1027 = vmatpush.bf16.msra.mxu0 0
    %1028 = vmatpush.bf16.msra.mxu0 0
    %1029 = vmatpush.bf16.msra.mxu0 0
    %1030 = vmatpush.bf16.msra.mxu0 0
    %1031 = vmatpush.bf16.msra.mxu0 0
    %1032 = vmatpush.bf16.msra.mxu0 %v1002
    %1033 = vmatmul.bf16.gmra.mxu0 %v1010
    %v1034 = vpop.f32.mrf.mxu0
    %v1035 = vadd.f32 0.0, %v1034
    %v1036 = vpop.f32.mrf.mxu0
    %1037 = vdwg.mxu0
    %1038 = vmatpush.bf16.msra.mxu0 0
    %1039 = vmatpush.bf16.msra.mxu0 0
    %1040 = vmatpush.bf16.msra.mxu0 0
    %1041 = vmatpush.bf16.msra.mxu0 0
    %1042 = vmatpush.bf16.msra.mxu0 0
    %1043 = vmatpush.bf16.msra.mxu0 0
    %1044 = vmatpush.bf16.msra.mxu0 0
    %1045 = vmatpush.bf16.msra.mxu0 %v1003
    %1046 = vmatmul.bf16.gmra.mxu0 %v1010
    %v1047 = vpop.f32.mrf.mxu0
    %v1048 = vadd.f32 0.0, %v1047
    %v1049 = vpop.f32.mrf.mxu0
    %1050 = vdwg.mxu0
    %1051 = vmatpush.bf16.msra.mxu0 0
    %1052 = vmatpush.bf16.msra.mxu0 0
    %1053 = vmatpush.bf16.msra.mxu0 0
    %1054 = vmatpush.bf16.msra.mxu0 0
    %1055 = vmatpush.bf16.msra.mxu0 0
    %1056 = vmatpush.bf16.msra.mxu0 0
    %1057 = vmatpush.bf16.msra.mxu0 0
    %1058 = vmatpush.bf16.msra.mxu0 %v1004
    %1059 = vmatmul.bf16.gmra.mxu0 %v1010
    %v1060 = vpop.f32.mrf.mxu0
    %v1061 = vadd.f32 0.0, %v1060
    %v1062 = vpop.f32.mrf.mxu0
    %1063 = vdwg.mxu0
    %v1068 = vrot.slane %v1035, 7
    %v1069 = vrot.slane %v1048, 6
    %v1070 = vrot.slane %v1061, 5
    %v1071 = vsel %vm300, %v1022, %v1068
    %v1072 = vsel %vm302, %v1069, %v1070
    %v1073 = vsel %vm304, %v1071, %v1072
    %v1075 = vadd.f32 %v984, %v1073
    %v1076 = vxor.u32 %v1075, 2147483648
    %v1077 = vmul.f32 %v1076, 1.442695
    %v1078 = vpow.pop %v1077
    %v1079 = vadd.f32 %v1078, 1.0
    %v1080 = vrcp.pop %v1079
    %v1081 = vmul.f32 %v1079, %v1080
    %v1082 = vsub.f32 1.0, %v1081
    %v1083 = vmul.f32 %v1080, %v1082
    %v1084 = vadd.f32 %v1080, %v1083
    %vm1085 = vweird.f32 %v1079
    %vm1086 = vweird.f32 %v1080
    %vm1087 = vmor %vm1085, %vm1086
    %v1088 = vsel %vm1087, %v1080, %v1084
    %v1089 = vand.u32 2147483647, %v1079
    %vm1090 = vcmp.eq.f32.partialorder %v1089, 8.507059e+37
    %v1091 = vand.u32 %v1079, 2147483648
    %v1092 = vor.u32 1.1754944e-38, %v1091
    %v1093 = vsel %vm1090, %v1092, %v1088
    %v1094 = vmul.f32 1.0, %v1093
    %v1096 = vrot.slane %v1075, 3
    %v1098 = vtanh.pop %v1096
    %v1100 = vrot.slane %v1094, 1
    %v1102 = vmul.f32 %v1100, %v976
    %v1103 = vmul.f32 %v1094, %v1098
    %v1104 = vadd.f32 %v1102, %v1103
    %v1105 = vtanh.pop %v1104
    %v1106 = vrot.slane %v1094, 2
    %v1108 = vmul.f32 %v1106, %v1105
    %1109 = vst [vmem:[#allocation11 + $0x6] sm:$0x1] %v1108
    %v1110 = vpack.c.bf16 %v1108, %v1108
    %s1111 = scalar_lea.vmem [#allocation2], 7
    %v1112 = vld [vmem:[%s1111] ss:$8 sm:$0xf]
    %v1113 = vld [vmem:[#allocation3] sm:$0xff]
    %v1114 = vld [vmem:[#allocation3 + $0x8] sm:$0xff]
    %v1115 = vld [vmem:[#allocation3 + $0x10] sm:$0xff]
    %v1116 = vld [vmem:[#allocation3 + $0x18] sm:$0xff]
    %v1121 = vunpack.c.l.b16 %v1113
    %v1122 = vunpack.c.h.b16 %v1113
    %v1123 = vunpack.c.l.b16 %v1114
    %v1124 = vunpack.c.h.b16 %v1114
    %v1125 = vunpack.c.l.b16 %v1115
    %v1126 = vunpack.c.h.b16 %v1115
    %v1127 = vunpack.c.l.b16 %v1116
    %v1128 = vunpack.c.h.b16 %v1116
    %v1129 = vpack.c.b16 %v1125, %v1121
    %v1130 = vpack.c.b16 %v1126, %v1122
    %v1131 = vpack.c.b16 %v1127, %v1123
    %v1132 = vpack.c.b16 %v1128, %v1124
    %v1138 = vsel %vm237, %v1110, 0
    %1140 = vmatpush.bf16.msra.mxu0 0
    %1141 = vmatpush.bf16.msra.mxu0 0
    %1142 = vmatpush.bf16.msra.mxu0 0
    %1143 = vmatpush.bf16.msra.mxu0 0
    %1144 = vmatpush.bf16.msra.mxu0 0
    %1145 = vmatpush.bf16.msra.mxu0 0
    %1146 = vmatpush.bf16.msra.mxu0 0
    %1147 = vmatpush.bf16.msra.mxu0 %v1129
    %1148 = vmatmul.bf16.gmra.mxu0 %v1138
    %v1149 = vpop.f32.mrf.mxu0
    %v1150 = vadd.f32 0.0, %v1149
    %v1151 = vpop.f32.mrf.mxu0
    %1152 = vdwg.mxu0
    %1153 = vmatpush.bf16.msra.mxu0 0
    %1154 = vmatpush.bf16.msra.mxu0 0
    %1155 = vmatpush.bf16.msra.mxu0 0
    %1156 = vmatpush.bf16.msra.mxu0 0
    %1157 = vmatpush.bf16.msra.mxu0 0
    %1158 = vmatpush.bf16.msra.mxu0 0
    %1159 = vmatpush.bf16.msra.mxu0 0
    %1160 = vmatpush.bf16.msra.mxu0 %v1130
    %1161 = vmatmul.bf16.gmra.mxu0 %v1138
    %v1162 = vpop.f32.mrf.mxu0
    %v1163 = vadd.f32 0.0, %v1162
    %v1164 = vpop.f32.mrf.mxu0
    %1165 = vdwg.mxu0
    %1166 = vmatpush.bf16.msra.mxu0 0
    %1167 = vmatpush.bf16.msra.mxu0 0
    %1168 = vmatpush.bf16.msra.mxu0 0
    %1169 = vmatpush.bf16.msra.mxu0 0
    %1170 = vmatpush.bf16.msra.mxu0 0
    %1171 = vmatpush.bf16.msra.mxu0 0
    %1172 = vmatpush.bf16.msra.mxu0 0
    %1173 = vmatpush.bf16.msra.mxu0 %v1131
    %1174 = vmatmul.bf16.gmra.mxu0 %v1138
    %v1175 = vpop.f32.mrf.mxu0
    %v1176 = vadd.f32 0.0, %v1175
    %v1177 = vpop.f32.mrf.mxu0
    %1178 = vdwg.mxu0
    %1179 = vmatpush.bf16.msra.mxu0 0
    %1180 = vmatpush.bf16.msra.mxu0 0
    %1181 = vmatpush.bf16.msra.mxu0 0
    %1182 = vmatpush.bf16.msra.mxu0 0
    %1183 = vmatpush.bf16.msra.mxu0 0
    %1184 = vmatpush.bf16.msra.mxu0 0
    %1185 = vmatpush.bf16.msra.mxu0 0
    %1186 = vmatpush.bf16.msra.mxu0 %v1132
    %1187 = vmatmul.bf16.gmra.mxu0 %v1138
    %v1188 = vpop.f32.mrf.mxu0
    %v1189 = vadd.f32 0.0, %v1188
    %v1190 = vpop.f32.mrf.mxu0
    %1191 = vdwg.mxu0
    %v1196 = vrot.slane %v1163, 7
    %v1197 = vrot.slane %v1176, 6
    %v1198 = vrot.slane %v1189, 5
    %v1199 = vsel %vm300, %v1150, %v1196
    %v1200 = vsel %vm302, %v1197, %v1198
    %v1201 = vsel %vm304, %v1199, %v1200
    %v1203 = vadd.f32 %v1112, %v1201
    %v1204 = vxor.u32 %v1203, 2147483648
    %v1205 = vmul.f32 %v1204, 1.442695
    %v1206 = vpow.pop %v1205
    %v1207 = vadd.f32 %v1206, 1.0
    %v1208 = vrcp.pop %v1207
    %v1209 = vmul.f32 %v1207, %v1208
    %v1210 = vsub.f32 1.0, %v1209
    %v1211 = vmul.f32 %v1208, %v1210
    %v1212 = vadd.f32 %v1208, %v1211
    %vm1213 = vweird.f32 %v1207
    %vm1214 = vweird.f32 %v1208
    %vm1215 = vmor %vm1213, %vm1214
    %v1216 = vsel %vm1215, %v1208, %v1212
    %v1217 = vand.u32 2147483647, %v1207
    %vm1218 = vcmp.eq.f32.partialorder %v1217, 8.507059e+37
    %v1219 = vand.u32 %v1207, 2147483648
    %v1220 = vor.u32 1.1754944e-38, %v1219
    %v1221 = vsel %vm1218, %v1220, %v1216
    %v1222 = vmul.f32 1.0, %v1221
    %v1224 = vrot.slane %v1203, 3
    %v1226 = vtanh.pop %v1224
    %v1228 = vrot.slane %v1222, 1
    %v1230 = vmul.f32 %v1228, %v1104
    %v1231 = vmul.f32 %v1222, %v1226
    %v1232 = vadd.f32 %v1230, %v1231
    %v1233 = vtanh.pop %v1232
    %v1234 = vrot.slane %v1222, 2
    %v1236 = vmul.f32 %v1234, %v1233
    %1237 = vst [vmem:[#allocation11 + $0x7] sm:$0x1] %v1236
    %1238 = vst [vmem:[#allocation12] sm:$0x1] %v1236
    %1239 = vst [vmem:[#allocation14] sm:$0x1] %v1232
    // Predicated region
    $region30: #{_lstm_forward.1} parent=1 // pred_check
      _
    $region31: #{_lstm_forward.1} parent=1 // pred_check_branch
      %1241 = sbr.rel (0) target = $region33
    $region32: #{_lstm_forward.1} parent=1 // pred_region
      %1243 = vsyncadd [#allocation7], 0
      %s1245 = sshll.u32 [#allocation11], 4
      %s1246 = int_to_ptr.vmem [resolvable:$true] %s1245
      %s1247 = sshll.u32 %s4, 4
      %s1248 = int_to_ptr.hbm [resolvable:$true] %s1247
      %1250 = dma.vmem_to_hbm [thread:$0]  %s1246, 128, %s1248, [#allocation7]
    $region33: #{_lstm_forward.1} parent=1 // pred_fallthru
      _
    // Predicated region
    $region34: #{_lstm_forward.1} parent=1 // pred_check
      _
    $region35: #{_lstm_forward.1} parent=1 // pred_check_branch
      %1252 = sbr.rel (0) target = $region37
    $region36: #{_lstm_forward.1} parent=1 // pred_region
      %1254 = vsyncadd [#allocation13], 0
      %s1256 = sshll.u32 [#allocation12], 4
      %s1257 = int_to_ptr.vmem [resolvable:$true] %s1256
      %s1258 = sshll.u32 %s5, 4
      %s1259 = int_to_ptr.hbm [resolvable:$true] %s1258
      %1261 = dma.vmem_to_hbm [thread:$0]  %s1257, 16, %s1259, [#allocation13]
    $region37: #{_lstm_forward.1} parent=1 // pred_fallthru
      _
    // Predicated region
    $region38: #{_lstm_forward.1} parent=1 // pred_check
      _
    $region39: #{_lstm_forward.1} parent=1 // pred_check_branch
      %1263 = sbr.rel (0) target = $region41
    $region40: #{_lstm_forward.1} parent=1 // pred_region
      %1265 = vsyncadd [#allocation13], 0
      %s1267 = sshll.u32 [#allocation14], 4
      %s1268 = int_to_ptr.vmem [resolvable:$true] %s1267
      %s1269 = sshll.u32 %s6, 4
      %s1270 = int_to_ptr.hbm [resolvable:$true] %s1269
      %1272 = dma.vmem_to_hbm [thread:$0]  %s1268, 16, %s1270, [#allocation13]
    $region41: #{_lstm_forward.1} parent=1 // pred_fallthru
      _
    // Predicated region
    $region42: #{_lstm_forward.1} parent=1 // pred_check
      _
    $region43: #{_lstm_forward.1} parent=1 // pred_check_branch
      %1274 = sbr.rel (0) target = $region45
    $region44: #{_lstm_forward.1} parent=1 // pred_region
      %1276 = dma.done [#allocation7], 128
    $region45: #{_lstm_forward.1} parent=1 // pred_fallthru
      _
    // Predicated region
    $region46: #{_lstm_forward.1} parent=1 // pred_check
      _
    $region47: #{_lstm_forward.1} parent=1 // pred_check_branch
      %1278 = sbr.rel (0) target = $region49
    $region48: #{_lstm_forward.1} parent=1 // pred_region
      %1280 = dma.done [#allocation13], 16
    $region49: #{_lstm_forward.1} parent=1 // pred_fallthru
      _
    // Predicated region
    $region50: #{_lstm_forward.1} parent=1 // pred_check
      _
    $region51: #{_lstm_forward.1} parent=1 // pred_check_branch
      %1282 = sbr.rel (0) target = $region53
    $region52: #{_lstm_forward.1} parent=1 // pred_region
      %1284 = dma.done [#allocation13], 16
    $region53: #{_lstm_forward.1} parent=1 // pred_fallthru
      _
    %1285 = vsyncpa [#allocation6], 1
    %1286 = vsyncpa [#allocation9], 1
    %1287 = vsyncpa [#allocation7], 1
    %1288 = vsyncpa [#allocation13], 1
  %1289 = vsyncmov [#allocation4]
  %s1290 = vpop.sfrf %1289
  %p1291 = scmp.eq.s32.totalorder %s1290, 0
  %p1292 = pneg %p1291
  %1294 = shalt.err (%p1292)

</llo_original>
